<compile_context>
chip_gen: v6e
topology: v6e:2x2x1
jax: 0.10.0
libtpu: 0.0.40
codegen_flags: <defaults>
</compile_context>

<pallas_src>
import functools

import jax
import jax.numpy as jnp
import numpy as np
from jax.experimental import pallas as pl
from jax.experimental.pallas import tpu as pltpu

_F32_MIN = float(jnp.finfo(jnp.float32).min)


def _erf_poly(x):
    # Abramowitz & Stegun 7.1.26 rational erf approximation (|err| < 1.5e-7),
    # built from abs/mul/add/exp + EUP reciprocal so it lowers cleanly.
    a1, a2, a3, a4, a5 = 0.254829592, -0.284496736, 1.421413741, -1.453152027, 1.061405429
    p = 0.3275911
    s = jnp.where(x >= 0.0, 1.0, -1.0)
    ax = jnp.abs(x)
    t = pl.reciprocal(1.0 + p * ax, approx=True)
    poly = ((((a5 * t + a4) * t + a3) * t + a2) * t + a1) * t
    return s * (1.0 - poly * jnp.exp(-ax * ax))


def _gelu_exact(x):
    # PyTorch nn.GELU() default is the erf ("exact") formulation.
    return 0.5 * x * (1.0 + _erf_poly(x * 0.7071067811865476))


def _cross_attention_kernel(nh, hd, H,
                            q_ref, kv_ref, qm_ref, km_ref,
                            rmsw_ref, wq_ref, bq_ref, wkv_ref, bkv_ref,
                            wo_ref, lnw_ref, lnb_ref, w1_ref, w2_ref, g_ref,
                            out_ref, ctx_ref):
    x = q_ref[0]          # (Q, H)  query/text stream, f32
    kv = kv_ref[0]        # (K, Dp) protein stream, f32
    qm = qm_ref[0]        # (Q, 1)  query attention mask
    km = km_ref[0]        # (1, K)  kv attention mask

    # ---- RMSNorm(hidden) on query stream (eps=1e-6), stats in f32 ----
    ms = jnp.mean(x * x, axis=-1, keepdims=True)
    xn = x * jax.lax.rsqrt(ms + 1e-6) * rmsw_ref[...]

    # ---- Q projection (num_heads**-0.5 scale pre-folded into wq/bq) ----
    # bf16 MXU inputs, f32 accumulation.
    q = jnp.dot(xn.astype(jnp.bfloat16), wq_ref[...],
                preferred_element_type=jnp.float32) + bq_ref[...]
    # ---- fused K|V projection: one (K, Dp) x (Dp, 2H) matmul ----
    kvp = jnp.dot(kv.astype(jnp.bfloat16), wkv_ref[...],
                  preferred_element_type=jnp.float32) + bkv_ref[...]
    k = kvp[:, :H]
    v = kvp[:, H:]

    mask = qm * km        # (Q, K) = query_mask[:,None] * kv_mask[None,:]

    # ---- per-head attention (heads small & static -> unrolled);
    #      context written into a (Q, H) VMEM scratch via static slices ----
    for h in range(nh):
        sl = slice(h * hd, (h + 1) * hd)
        s = jax.lax.dot_general(q[:, sl], k[:, sl], (((1,), (1,)), ((), ())),
                                preferred_element_type=jnp.float32)   # (Q, K)
        # masked_fill; pre-mask amax dropped (softmax is shift-invariant,
        # result identical including fully-masked rows -> uniform probs).
        s = jnp.where(mask == 1.0, s, _F32_MIN)
        e = jnp.exp(s - jnp.max(s, axis=-1, keepdims=True))
        p = e * pl.reciprocal(jnp.sum(e, axis=-1, keepdims=True), approx=True)
        ctx_ref[:, sl] = jnp.dot(p, v[:, sl], preferred_element_type=jnp.float32)

    attn_out = jnp.dot(ctx_ref[...].astype(jnp.bfloat16), wo_ref[...],
                       preferred_element_type=jnp.float32)            # out_proj, no bias

    # ---- gated residuals (gates already tanh'ed, read as SMEM scalars) ----
    ga = g_ref[0]
    gf = g_ref[1]
    h1 = x + ga * attn_out

    # ---- FeedForward: LayerNorm -> Linear -> GELU -> Linear (f32 stats) ----
    mu = jnp.mean(h1, axis=-1, keepdims=True)
    var = jnp.mean((h1 - mu) * (h1 - mu), axis=-1, keepdims=True)
    ln = (h1 - mu) * jax.lax.rsqrt(var + 1e-5) * lnw_ref[...] + lnb_ref[...]
    u = _gelu_exact(jnp.dot(ln.astype(jnp.bfloat16), w1_ref[...],
                            preferred_element_type=jnp.float32))
    ffo = jnp.dot(u.astype(jnp.bfloat16), w2_ref[...],
                  preferred_element_type=jnp.float32)

    out_ref[0] = h1 + gf * ffo


def cross_attention_forward(params, query_states, protein_kv_states,
                            query_attn_mask, protein_batch_mask,
                            num_attention_heads):
    bs, Q, H = query_states.shape
    _, K, Dp = protein_kv_states.shape
    nh = num_attention_heads
    hd = H // nh
    inner = params["ff_w1"].shape[1]
    scale = nh ** (-0.5)   # module scales by num_heads**-0.5 (not head_dim)

    query_states = query_states.astype(jnp.float32)
    protein_kv_states = protein_kv_states.astype(jnp.float32)

    # protein_kv_attn_mask built exactly like the PyTorch forward (ones * batch_mask).
    kv_mask = (jnp.ones((bs, K), jnp.float32)
               * protein_batch_mask.astype(jnp.float32)[:, None])
    qm3 = query_attn_mask.astype(jnp.float32)[:, :, None]   # (bs, Q, 1)
    km3 = kv_mask[:, None, :]                                # (bs, 1, K)

    # TODO(synk): structure / msa modalities are configured off (encoder dims None);
    # multi-modality KV concatenation along the kv axis is not exercised here.

    wdt = jnp.bfloat16   # weights in bf16: halves HBM/VMEM, bf16-native MXU on v6e/v7x
    wq = (params["wq"] * scale).astype(wdt)                  # scale folded into Wq/bq
    bq = (params["bq"] * scale).reshape(1, H).astype(jnp.float32)
    wkv = jnp.concatenate([params["wk"], params["wv"]], axis=1).astype(wdt)   # (Dp, 2H)
    bkv = jnp.concatenate([params["bk"], params["bv"]]).reshape(1, 2 * H).astype(jnp.float32)
    wo = params["wo"].astype(wdt)
    w1 = params["ff_w1"].astype(wdt)
    w2 = params["ff_w2"].astype(wdt)
    rmsw = params["rms_weight"].reshape(1, H).astype(jnp.float32)
    lnw = params["ln_weight"].reshape(1, H).astype(jnp.float32)
    lnb = params["ln_bias"].reshape(1, H).astype(jnp.float32)
    # tanh(gates) precomputed; passed as two SMEM scalars.
    gates = jnp.tanh(jnp.concatenate([params["gate_attention"],
                                      params["gate_ffw"]]).astype(jnp.float32))  # (2,)

    batch_map3 = lambda b: (b, 0, 0)
    const_map2 = lambda b: (0, 0)

    # TODO(synk): for production H (e.g. >=1024, inner=4H) mark the constant
    # weight specs single-buffered (pipeline_mode=pl.Buffered(1)) and/or tile the
    # FFN inner dim with a second "arbitrary" grid axis + raise vmem_limit_bytes;
    # at these toy shapes the default double-buffering is harmless.  Likewise,
    # production feature dims should be padded to multiples of 128 for lane-dense
    # (unmasked) stores.
    in_specs = [
        pl.BlockSpec((1, Q, H), batch_map3),    # query_states
        pl.BlockSpec((1, K, Dp), batch_map3),   # protein_kv_states
        pl.BlockSpec((1, Q, 1), batch_map3),    # query mask
        pl.BlockSpec((1, 1, K), batch_map3),    # kv mask
        pl.BlockSpec((1, H), const_map2),       # rms weight
        pl.BlockSpec((H, H), const_map2),       # Wq (scaled, bf16)
        pl.BlockSpec((1, H), const_map2),       # bq (scaled)
        pl.BlockSpec((Dp, 2 * H), const_map2),  # Wk|Wv fused
        pl.BlockSpec((1, 2 * H), const_map2),   # bk|bv fused
        pl.BlockSpec((H, H), const_map2),       # Wo (out_proj)
        pl.BlockSpec((1, H), const_map2),       # LayerNorm weight
        pl.BlockSpec((1, H), const_map2),       # LayerNorm bias
        pl.BlockSpec((H, inner), const_map2),   # FF W1
        pl.BlockSpec((inner, H), const_map2),   # FF W2
        pl.BlockSpec(memory_space=pltpu.MemorySpace.SMEM),  # tanh(gates), 2 scalars
    ]

    kernel = functools.partial(_cross_attention_kernel, nh, hd, H)

    def _run(operands):
        qs, kvs, qm, km = operands
        return pl.pallas_call(
            kernel,
            out_shape=jax.ShapeDtypeStruct((bs, Q, H), jnp.float32),
            grid=(bs,),
            in_specs=in_specs,
            out_specs=pl.BlockSpec((1, Q, H), batch_map3),
            scratch_shapes=[pltpu.VMEM((Q, H), jnp.float32)],
            compiler_params=pltpu.CompilerParams(
                dimension_semantics=("parallel",)),   # batch is independent -> 2 TCs on v7x
        )(qs, kvs, qm, km, rmsw, wq, bq, wkv, bkv, wo, lnw, lnb, w1, w2, gates)

    def _skip(operands):
        return operands[0]   # block skipped in the PyTorch forward -> identity

    # jit-safe replacement for the PyTorch `...any()` gate (no host sync).
    any_kv = jnp.any(kv_mask > 0.0)
    return jax.lax.cond(any_kv, _run, _skip,
                        (query_states, protein_kv_states, qm3, km3))


def init_params(key, hidden, protein_dim, ffn_mult=4):
    inner = hidden * ffn_mult
    ks = jax.random.split(key, 10)

    def lin(k, fi, fo, s=0.05):
        return jax.random.normal(k, (fi, fo), jnp.float32) * s

    return dict(
        rms_weight=jnp.ones((hidden,), jnp.float32),
        wq=lin(ks[0], hidden, hidden),
        bq=jax.random.normal(ks[1], (hidden,), jnp.float32) * 0.02,
        wk=lin(ks[2], protein_dim, hidden),
        bk=jax.random.normal(ks[3], (hidden,), jnp.float32) * 0.02,
        wv=lin(ks[4], protein_dim, hidden),
        bv=jax.random.normal(ks[5], (hidden,), jnp.float32) * 0.02,
        wo=lin(ks[6], hidden, hidden),
        ln_weight=jnp.ones((hidden,), jnp.float32),
        ln_bias=jnp.zeros((hidden,), jnp.float32),
        ff_w1=lin(ks[7], hidden, inner),
        ff_w2=lin(ks[8], inner, hidden),
        # Module __init__ sets gates to 0.0 (block becomes identity); use nonzero
        # deterministic values so the kernel path is actually exercised.
        gate_attention=jnp.array([0.3], jnp.float32),
        gate_ffw=jnp.array([-0.2], jnp.float32),
    )


def reference_forward(params, query_states, protein_kv_states, query_attn_mask,
                      protein_batch_mask, nh):
    # Pure-JAX f32 replica of the PyTorch forward (protein modality only).
    bs, Q, H = query_states.shape
    _, K, _ = protein_kv_states.shape
    hd = H // nh
    kv_mask = jnp.ones((bs, K), jnp.float32) * protein_batch_mask[:, None]
    x = query_states
    ms = jnp.mean(x * x, axis=-1, keepdims=True)
    xn = x * jax.lax.rsqrt(ms + 1e-6) * params["rms_weight"]
    q = xn @ params["wq"] + params["bq"]
    k = protein_kv_states @ params["wk"] + params["bk"]
    v = protein_kv_states @ params["wv"] + params["bv"]

    def split(t, L):
        return t.reshape(bs, L, nh, hd).transpose(0, 2, 1, 3)

    qh = split(q, Q) * nh ** (-0.5)
    kh = split(k, K)
    vh = split(v, K)
    mask = query_attn_mask[:, None, :, None] * kv_mask[:, None, None, :]
    s = jnp.einsum("bhqd,bhkd->bhqk", qh, kh)
    s = s - jnp.max(s, axis=-1, keepdims=True)
    s = jnp.where(mask == 1.0, s, jnp.finfo(jnp.float32).min)
    p = jax.nn.softmax(s, axis=-1)
    ctx = jnp.einsum("bhqk,bhkd->bhqd", p, vh)
    ctx = ctx.transpose(0, 2, 1, 3).reshape(bs, Q, H)
    attn_out = ctx @ params["wo"]
    h1 = x + jnp.tanh(params["gate_attention"]) * attn_out
    mu = jnp.mean(h1, axis=-1, keepdims=True)
    var = jnp.mean((h1 - mu) ** 2, axis=-1, keepdims=True)
    ln = (h1 - mu) / jnp.sqrt(var + 1e-5) * params["ln_weight"] + params["ln_bias"]
    ff = jax.nn.gelu(ln @ params["ff_w1"], approximate=False) @ params["ff_w2"]
    return h1 + jnp.tanh(params["gate_ffw"]) * ff


if __name__ == "__main__":
    bs, Q, K, H, Dp, nh = 2, 8, 16, 32, 48, 4

    key = jax.random.PRNGKey(0)
    k_q, k_kv, k_p = jax.random.split(key, 3)
    query_states = jax.random.normal(k_q, (bs, Q, H), jnp.float32)
    protein_kv_states = jax.random.normal(k_kv, (bs, K, Dp), jnp.float32)
    query_attn_mask = jnp.ones((bs, Q), jnp.float32).at[0, -2:].set(0.0)
    protein_batch_mask = jnp.array([1.0, 1.0], jnp.float32)

    params = init_params(k_p, H, Dp, ffn_mult=4)

    fwd = jax.jit(lambda p, qs, kvs, qam, pbm:
                  cross_attention_forward(p, qs, kvs, qam, pbm, nh))
    out = jax.block_until_ready(fwd(params, query_states, protein_kv_states,
                                    query_attn_mask, protein_batch_mask))

    ref = reference_forward(params, query_states, protein_kv_states,
                            query_attn_mask, protein_batch_mask, nh)
    # bf16 weights / bf16 MXU inputs vs f32 reference -> relaxed tolerance.
    np.testing.assert_allclose(np.asarray(out), np.asarray(ref),
                               rtol=1e-2, atol=1e-2)
    print("KERNEL_OK")
</pallas_src>

<mosaic_0001>
module attributes {stable_mosaic.version = 11 : i64} {
  func.func @_cross_attention_kernel(%arg0: i32, %arg1: memref<1x8x32xf32, #tpu.memory_space<vmem>>, %arg2: memref<1x16x48xf32, #tpu.memory_space<vmem>>, %arg3: memref<1x8x1xf32, #tpu.memory_space<vmem>>, %arg4: memref<1x1x16xf32, #tpu.memory_space<vmem>>, %arg5: memref<1x32xf32, #tpu.memory_space<vmem>>, %arg6: memref<32x32xbf16, #tpu.memory_space<vmem>>, %arg7: memref<1x32xf32, #tpu.memory_space<vmem>>, %arg8: memref<48x64xbf16, #tpu.memory_space<vmem>>, %arg9: memref<1x64xf32, #tpu.memory_space<vmem>>, %arg10: memref<32x32xbf16, #tpu.memory_space<vmem>>, %arg11: memref<1x32xf32, #tpu.memory_space<vmem>>, %arg12: memref<1x32xf32, #tpu.memory_space<vmem>>, %arg13: memref<32x128xbf16, #tpu.memory_space<vmem>>, %arg14: memref<128x32xbf16, #tpu.memory_space<vmem>>, %arg15: memref<2xf32, #tpu.memory_space<smem>>, %arg16: memref<1x8x32xf32, #tpu.memory_space<vmem>>, %arg17: memref<8x32xf32, #tpu.memory_space<vmem>>) attributes {dimension_semantics = [#tpu.dimension_semantics<parallel>], iteration_bounds = array<i64: 2>, scalar_prefetch = 0 : i64, scratch_operands = 1 : i64, tpu.core_type = #tpu.core_type<tc>, window_params = [{transform_indices = @transform_0, window_bounds = array<i64: 1, 8, 32>}, {transform_indices = @transform_1, window_bounds = array<i64: 1, 16, 48>}, {transform_indices = @transform_2, window_bounds = array<i64: 1, 8, 1>}, {transform_indices = @transform_3, window_bounds = array<i64: 1, 1, 16>}, {pipeline_mode = #tpu.pipeline_mode<synchronous>, transform_indices = @transform_4, window_bounds = array<i64: 1, 32>}, {pipeline_mode = #tpu.pipeline_mode<synchronous>, transform_indices = @transform_5, window_bounds = array<i64: 32, 32>}, {pipeline_mode = #tpu.pipeline_mode<synchronous>, transform_indices = @transform_6, window_bounds = array<i64: 1, 32>}, {pipeline_mode = #tpu.pipeline_mode<synchronous>, transform_indices = @transform_7, window_bounds = array<i64: 48, 64>}, {pipeline_mode = #tpu.pipeline_mode<synchronous>, transform_indices = @transform_8, window_bounds = array<i64: 1, 64>}, {pipeline_mode = #tpu.pipeline_mode<synchronous>, transform_indices = @transform_9, window_bounds = array<i64: 32, 32>}, {pipeline_mode = #tpu.pipeline_mode<synchronous>, transform_indices = @transform_10, window_bounds = array<i64: 1, 32>}, {pipeline_mode = #tpu.pipeline_mode<synchronous>, transform_indices = @transform_11, window_bounds = array<i64: 1, 32>}, {pipeline_mode = #tpu.pipeline_mode<synchronous>, transform_indices = @transform_12, window_bounds = array<i64: 32, 128>}, {pipeline_mode = #tpu.pipeline_mode<synchronous>, transform_indices = @transform_13, window_bounds = array<i64: 128, 32>}, {transform_indices = @transform_14, window_bounds = array<i64: 2>}, {transform_indices = @transform_15, window_bounds = array<i64: 1, 8, 32>}]} {
    %c0 = arith.constant 0 : index
    %c0_0 = arith.constant 0 : index
    %c0_1 = arith.constant 0 : index
    %0 = vector.load %arg1[%c0, %c0_0, %c0_1] : memref<1x8x32xf32, #tpu.memory_space<vmem>>, vector<1x8x32xf32>
    %1 = vector.shape_cast %0 : vector<1x8x32xf32> to vector<8x32xf32>
    %c0_2 = arith.constant 0 : index
    %c0_3 = arith.constant 0 : index
    %c0_4 = arith.constant 0 : index
    %2 = vector.load %arg2[%c0_2, %c0_3, %c0_4] : memref<1x16x48xf32, #tpu.memory_space<vmem>>, vector<1x16x48xf32>
    %3 = vector.shape_cast %2 : vector<1x16x48xf32> to vector<16x48xf32>
    %c0_5 = arith.constant 0 : index
    %c0_6 = arith.constant 0 : index
    %c0_7 = arith.constant 0 : index
    %4 = vector.load %arg3[%c0_5, %c0_6, %c0_7] : memref<1x8x1xf32, #tpu.memory_space<vmem>>, vector<1x8x1xf32>
    %5 = vector.shape_cast %4 : vector<1x8x1xf32> to vector<8x1xf32>
    %c0_8 = arith.constant 0 : index
    %c0_9 = arith.constant 0 : index
    %c0_10 = arith.constant 0 : index
    %6 = vector.load %arg4[%c0_8, %c0_9, %c0_10] : memref<1x1x16xf32, #tpu.memory_space<vmem>>, vector<1x1x16xf32>
    %7 = vector.shape_cast %6 : vector<1x1x16xf32> to vector<1x16xf32>
    %8 = arith.mulf %1, %1 : vector<8x32xf32>
    %cst = arith.constant dense<0.000000e+00> : vector<8xf32>
    %9 = vector.multi_reduction <add>, %8, %cst [1] : vector<8x32xf32> to vector<8xf32>
    %10 = vector.shape_cast %9 : vector<8xf32> to vector<8x1xf32>
    %cst_11 = arith.constant 3.200000e+01 : f32
    %11 = vector.broadcast %cst_11 : f32 to vector<8x1xf32>
    %12 = arith.divf %10, %11 : vector<8x1xf32>
    %cst_12 = arith.constant 9.99999997E-7 : f32
    %13 = vector.broadcast %cst_12 : f32 to vector<8x1xf32>
    %14 = arith.addf %12, %13 : vector<8x1xf32>
    %15 = math.rsqrt %14 : vector<8x1xf32>
    %16 = vector.broadcast %15 : vector<8x1xf32> to vector<8x32xf32>
    %17 = arith.mulf %1, %16 : vector<8x32xf32>
    %c0_13 = arith.constant 0 : index
    %c0_14 = arith.constant 0 : index
    %18 = vector.load %arg5[%c0_13, %c0_14] : memref<1x32xf32, #tpu.memory_space<vmem>>, vector<1x32xf32>
    %19 = vector.broadcast %18 : vector<1x32xf32> to vector<8x32xf32>
    %20 = arith.mulf %17, %19 : vector<8x32xf32>
    %21 = arith.truncf %20 : vector<8x32xf32> to vector<8x32xbf16>
    %c0_15 = arith.constant 0 : index
    %c0_16 = arith.constant 0 : index
    %22 = vector.load %arg6[%c0_15, %c0_16] : memref<32x32xbf16, #tpu.memory_space<vmem>>, vector<32x32xbf16>
    %cst_17 = arith.constant dense<0.000000e+00> : vector<8x32xf32>
    %23 = tpu.matmul %21, %22, %cst_17 {dimension_numbers = #tpu.dot_dimension_numbers<[1], [0], [0], [1], [0, 0, 1, 1], [], []>} : vector<8x32xbf16>, vector<32x32xbf16>, vector<8x32xf32> -> vector<8x32xf32>
    %c0_18 = arith.constant 0 : index
    %c0_19 = arith.constant 0 : index
    %24 = vector.load %arg7[%c0_18, %c0_19] : memref<1x32xf32, #tpu.memory_space<vmem>>, vector<1x32xf32>
    %25 = vector.broadcast %24 : vector<1x32xf32> to vector<8x32xf32>
    %26 = arith.addf %23, %25 : vector<8x32xf32>
    %27 = arith.truncf %3 : vector<16x48xf32> to vector<16x48xbf16>
    %c0_20 = arith.constant 0 : index
    %c0_21 = arith.constant 0 : index
    %28 = vector.load %arg8[%c0_20, %c0_21] : memref<48x64xbf16, #tpu.memory_space<vmem>>, vector<48x64xbf16>
    %cst_22 = arith.constant dense<0.000000e+00> : vector<16x64xf32>
    %29 = tpu.matmul %27, %28, %cst_22 {dimension_numbers = #tpu.dot_dimension_numbers<[1], [0], [0], [1], [0, 0, 1, 1], [], []>} : vector<16x48xbf16>, vector<48x64xbf16>, vector<16x64xf32> -> vector<16x64xf32>
    %c0_23 = arith.constant 0 : index
    %c0_24 = arith.constant 0 : index
    %30 = vector.load %arg9[%c0_23, %c0_24] : memref<1x64xf32, #tpu.memory_space<vmem>>, vector<1x64xf32>
    %31 = vector.broadcast %30 : vector<1x64xf32> to vector<16x64xf32>
    %32 = arith.addf %29, %31 : vector<16x64xf32>
    %33 = vector.extract_strided_slice %32 {offsets = [0, 0], sizes = [16, 32], strides = [1, 1]} : vector<16x64xf32> to vector<16x32xf32>
    %34 = vector.extract_strided_slice %32 {offsets = [0, 32], sizes = [16, 32], strides = [1, 1]} : vector<16x64xf32> to vector<16x32xf32>
    %35 = vector.broadcast %5 : vector<8x1xf32> to vector<8x16xf32>
    %36 = vector.broadcast %7 : vector<1x16xf32> to vector<8x16xf32>
    %37 = arith.mulf %35, %36 : vector<8x16xf32>
    %38 = vector.extract_strided_slice %26 {offsets = [0, 0], sizes = [8, 8], strides = [1, 1]} : vector<8x32xf32> to vector<8x8xf32>
    %39 = vector.extract_strided_slice %33 {offsets = [0, 0], sizes = [16, 8], strides = [1, 1]} : vector<16x32xf32> to vector<16x8xf32>
    %cst_25 = arith.constant dense<0.000000e+00> : vector<8x16xf32>
    %40 = tpu.matmul %38, %39, %cst_25 {dimension_numbers = #tpu.dot_dimension_numbers<[1], [1], [0], [0], [0, 0, 1, 0], [], []>} : vector<8x8xf32>, vector<16x8xf32>, vector<8x16xf32> -> vector<8x16xf32>
    %cst_26 = arith.constant 1.000000e+00 : f32
    %41 = vector.broadcast %cst_26 : f32 to vector<8x16xf32>
    %42 = arith.cmpf oeq, %37, %41 : vector<8x16xf32>
    %cst_27 = arith.constant -3.40282347E+38 : f32
    %43 = vector.broadcast %cst_27 : f32 to vector<8x16xf32>
    %44 = arith.select %42, %40, %43 : vector<8x16xi1>, vector<8x16xf32>
    %cst_28 = arith.constant dense<0xFF800000> : vector<8xf32>
    %45 = vector.multi_reduction <maximumf>, %44, %cst_28 [1] : vector<8x16xf32> to vector<8xf32>
    %46 = vector.shape_cast %45 : vector<8xf32> to vector<8x1xf32>
    %47 = vector.broadcast %46 : vector<8x1xf32> to vector<8x16xf32>
    %48 = arith.subf %44, %47 : vector<8x16xf32>
    %49 = math.exp %48 : vector<8x16xf32>
    %cst_29 = arith.constant dense<0.000000e+00> : vector<8xf32>
    %50 = vector.multi_reduction <add>, %49, %cst_29 [1] : vector<8x16xf32> to vector<8xf32>
    %51 = vector.shape_cast %50 : vector<8xf32> to vector<8x1xf32>
    %52 = tpu.reciprocal %51 {approx = true} : vector<8x1xf32> -> vector<8x1xf32>
    %53 = vector.broadcast %52 : vector<8x1xf32> to vector<8x16xf32>
    %54 = arith.mulf %49, %53 : vector<8x16xf32>
    %55 = vector.extract_strided_slice %34 {offsets = [0, 0], sizes = [16, 8], strides = [1, 1]} : vector<16x32xf32> to vector<16x8xf32>
    %cst_30 = arith.constant dense<0.000000e+00> : vector<8x8xf32>
    %56 = tpu.matmul %54, %55, %cst_30 {dimension_numbers = #tpu.dot_dimension_numbers<[1], [0], [0], [1], [0, 0, 1, 1], [], []>} : vector<8x16xf32>, vector<16x8xf32>, vector<8x8xf32> -> vector<8x8xf32>
    %c0_31 = arith.constant 0 : index
    %c0_32 = arith.constant 0 : index
    %57 = vector.load %arg17[%c0_31, %c0_32] : memref<8x32xf32, #tpu.memory_space<vmem>>, vector<8x8xf32>
    tpu.vector_store %arg17[%c0_31, %c0_32], %56 {strides = array<i32>} : memref<8x32xf32, #tpu.memory_space<vmem>>, vector<8x8xf32>,
    %58 = vector.extract_strided_slice %26 {offsets = [0, 8], sizes = [8, 8], strides = [1, 1]} : vector<8x32xf32> to vector<8x8xf32>
    %59 = vector.extract_strided_slice %33 {offsets = [0, 8], sizes = [16, 8], strides = [1, 1]} : vector<16x32xf32> to vector<16x8xf32>
    %cst_33 = arith.constant dense<0.000000e+00> : vector<8x16xf32>
    %60 = tpu.matmul %58, %59, %cst_33 {dimension_numbers = #tpu.dot_dimension_numbers<[1], [1], [0], [0], [0, 0, 1, 0], [], []>} : vector<8x8xf32>, vector<16x8xf32>, vector<8x16xf32> -> vector<8x16xf32>
    %cst_34 = arith.constant 1.000000e+00 : f32
    %61 = vector.broadcast %cst_34 : f32 to vector<8x16xf32>
    %62 = arith.cmpf oeq, %37, %61 : vector<8x16xf32>
    %cst_35 = arith.constant -3.40282347E+38 : f32
    %63 = vector.broadcast %cst_35 : f32 to vector<8x16xf32>
    %64 = arith.select %62, %60, %63 : vector<8x16xi1>, vector<8x16xf32>
    %cst_36 = arith.constant dense<0xFF800000> : vector<8xf32>
    %65 = vector.multi_reduction <maximumf>, %64, %cst_36 [1] : vector<8x16xf32> to vector<8xf32>
    %66 = vector.shape_cast %65 : vector<8xf32> to vector<8x1xf32>
    %67 = vector.broadcast %66 : vector<8x1xf32> to vector<8x16xf32>
    %68 = arith.subf %64, %67 : vector<8x16xf32>
    %69 = math.exp %68 : vector<8x16xf32>
    %cst_37 = arith.constant dense<0.000000e+00> : vector<8xf32>
    %70 = vector.multi_reduction <add>, %69, %cst_37 [1] : vector<8x16xf32> to vector<8xf32>
    %71 = vector.shape_cast %70 : vector<8xf32> to vector<8x1xf32>
    %72 = tpu.reciprocal %71 {approx = true} : vector<8x1xf32> -> vector<8x1xf32>
    %73 = vector.broadcast %72 : vector<8x1xf32> to vector<8x16xf32>
    %74 = arith.mulf %69, %73 : vector<8x16xf32>
    %75 = vector.extract_strided_slice %34 {offsets = [0, 8], sizes = [16, 8], strides = [1, 1]} : vector<16x32xf32> to vector<16x8xf32>
    %cst_38 = arith.constant dense<0.000000e+00> : vector<8x8xf32>
    %76 = tpu.matmul %74, %75, %cst_38 {dimension_numbers = #tpu.dot_dimension_numbers<[1], [0], [0], [1], [0, 0, 1, 1], [], []>} : vector<8x16xf32>, vector<16x8xf32>, vector<8x8xf32> -> vector<8x8xf32>
    %c0_39 = arith.constant 0 : index
    %c8 = arith.constant 8 : index
    %77 = vector.load %arg17[%c0_39, %c8] : memref<8x32xf32, #tpu.memory_space<vmem>>, vector<8x8xf32>
    tpu.vector_store %arg17[%c0_39, %c8], %76 {strides = array<i32>} : memref<8x32xf32, #tpu.memory_space<vmem>>, vector<8x8xf32>,
    %78 = vector.extract_strided_slice %26 {offsets = [0, 16], sizes = [8, 8], strides = [1, 1]} : vector<8x32xf32> to vector<8x8xf32>
    %79 = vector.extract_strided_slice %33 {offsets = [0, 16], sizes = [16, 8], strides = [1, 1]} : vector<16x32xf32> to vector<16x8xf32>
    %cst_40 = arith.constant dense<0.000000e+00> : vector<8x16xf32>
    %80 = tpu.matmul %78, %79, %cst_40 {dimension_numbers = #tpu.dot_dimension_numbers<[1], [1], [0], [0], [0, 0, 1, 0], [], []>} : vector<8x8xf32>, vector<16x8xf32>, vector<8x16xf32> -> vector<8x16xf32>
    %cst_41 = arith.constant 1.000000e+00 : f32
    %81 = vector.broadcast %cst_41 : f32 to vector<8x16xf32>
    %82 = arith.cmpf oeq, %37, %81 : vector<8x16xf32>
    %cst_42 = arith.constant -3.40282347E+38 : f32
    %83 = vector.broadcast %cst_42 : f32 to vector<8x16xf32>
    %84 = arith.select %82, %80, %83 : vector<8x16xi1>, vector<8x16xf32>
    %cst_43 = arith.constant dense<0xFF800000> : vector<8xf32>
    %85 = vector.multi_reduction <maximumf>, %84, %cst_43 [1] : vector<8x16xf32> to vector<8xf32>
    %86 = vector.shape_cast %85 : vector<8xf32> to vector<8x1xf32>
    %87 = vector.broadcast %86 : vector<8x1xf32> to vector<8x16xf32>
    %88 = arith.subf %84, %87 : vector<8x16xf32>
    %89 = math.exp %88 : vector<8x16xf32>
    %cst_44 = arith.constant dense<0.000000e+00> : vector<8xf32>
    %90 = vector.multi_reduction <add>, %89, %cst_44 [1] : vector<8x16xf32> to vector<8xf32>
    %91 = vector.shape_cast %90 : vector<8xf32> to vector<8x1xf32>
    %92 = tpu.reciprocal %91 {approx = true} : vector<8x1xf32> -> vector<8x1xf32>
    %93 = vector.broadcast %92 : vector<8x1xf32> to vector<8x16xf32>
    %94 = arith.mulf %89, %93 : vector<8x16xf32>
    %95 = vector.extract_strided_slice %34 {offsets = [0, 16], sizes = [16, 8], strides = [1, 1]} : vector<16x32xf32> to vector<16x8xf32>
    %cst_45 = arith.constant dense<0.000000e+00> : vector<8x8xf32>
    %96 = tpu.matmul %94, %95, %cst_45 {dimension_numbers = #tpu.dot_dimension_numbers<[1], [0], [0], [1], [0, 0, 1, 1], [], []>} : vector<8x16xf32>, vector<16x8xf32>, vector<8x8xf32> -> vector<8x8xf32>
    %c0_46 = arith.constant 0 : index
    %c16 = arith.constant 16 : index
    %97 = vector.load %arg17[%c0_46, %c16] : memref<8x32xf32, #tpu.memory_space<vmem>>, vector<8x8xf32>
    tpu.vector_store %arg17[%c0_46, %c16], %96 {strides = array<i32>} : memref<8x32xf32, #tpu.memory_space<vmem>>, vector<8x8xf32>,
    %98 = vector.extract_strided_slice %26 {offsets = [0, 24], sizes = [8, 8], strides = [1, 1]} : vector<8x32xf32> to vector<8x8xf32>
    %99 = vector.extract_strided_slice %33 {offsets = [0, 24], sizes = [16, 8], strides = [1, 1]} : vector<16x32xf32> to vector<16x8xf32>
    %cst_47 = arith.constant dense<0.000000e+00> : vector<8x16xf32>
    %100 = tpu.matmul %98, %99, %cst_47 {dimension_numbers = #tpu.dot_dimension_numbers<[1], [1], [0], [0], [0, 0, 1, 0], [], []>} : vector<8x8xf32>, vector<16x8xf32>, vector<8x16xf32> -> vector<8x16xf32>
    %cst_48 = arith.constant 1.000000e+00 : f32
    %101 = vector.broadcast %cst_48 : f32 to vector<8x16xf32>
    %102 = arith.cmpf oeq, %37, %101 : vector<8x16xf32>
    %cst_49 = arith.constant -3.40282347E+38 : f32
    %103 = vector.broadcast %cst_49 : f32 to vector<8x16xf32>
    %104 = arith.select %102, %100, %103 : vector<8x16xi1>, vector<8x16xf32>
    %cst_50 = arith.constant dense<0xFF800000> : vector<8xf32>
    %105 = vector.multi_reduction <maximumf>, %104, %cst_50 [1] : vector<8x16xf32> to vector<8xf32>
    %106 = vector.shape_cast %105 : vector<8xf32> to vector<8x1xf32>
    %107 = vector.broadcast %106 : vector<8x1xf32> to vector<8x16xf32>
    %108 = arith.subf %104, %107 : vector<8x16xf32>
    %109 = math.exp %108 : vector<8x16xf32>
    %cst_51 = arith.constant dense<0.000000e+00> : vector<8xf32>
    %110 = vector.multi_reduction <add>, %109, %cst_51 [1] : vector<8x16xf32> to vector<8xf32>
    %111 = vector.shape_cast %110 : vector<8xf32> to vector<8x1xf32>
    %112 = tpu.reciprocal %111 {approx = true} : vector<8x1xf32> -> vector<8x1xf32>
    %113 = vector.broadcast %112 : vector<8x1xf32> to vector<8x16xf32>
    %114 = arith.mulf %109, %113 : vector<8x16xf32>
    %115 = vector.extract_strided_slice %34 {offsets = [0, 24], sizes = [16, 8], strides = [1, 1]} : vector<16x32xf32> to vector<16x8xf32>
    %cst_52 = arith.constant dense<0.000000e+00> : vector<8x8xf32>
    %116 = tpu.matmul %114, %115, %cst_52 {dimension_numbers = #tpu.dot_dimension_numbers<[1], [0], [0], [1], [0, 0, 1, 1], [], []>} : vector<8x16xf32>, vector<16x8xf32>, vector<8x8xf32> -> vector<8x8xf32>
    %c0_53 = arith.constant 0 : index
    %c24 = arith.constant 24 : index
    %117 = vector.load %arg17[%c0_53, %c24] : memref<8x32xf32, #tpu.memory_space<vmem>>, vector<8x8xf32>
    tpu.vector_store %arg17[%c0_53, %c24], %116 {strides = array<i32>} : memref<8x32xf32, #tpu.memory_space<vmem>>, vector<8x8xf32>,
    %c0_54 = arith.constant 0 : index
    %c0_55 = arith.constant 0 : index
    %118 = vector.load %arg17[%c0_54, %c0_55] : memref<8x32xf32, #tpu.memory_space<vmem>>, vector<8x32xf32>
    %119 = arith.truncf %118 : vector<8x32xf32> to vector<8x32xbf16>
    %c0_56 = arith.constant 0 : index
    %c0_57 = arith.constant 0 : index
    %120 = vector.load %arg10[%c0_56, %c0_57] : memref<32x32xbf16, #tpu.memory_space<vmem>>, vector<32x32xbf16>
    %cst_58 = arith.constant dense<0.000000e+00> : vector<8x32xf32>
    %121 = tpu.matmul %119, %120, %cst_58 {dimension_numbers = #tpu.dot_dimension_numbers<[1], [0], [0], [1], [0, 0, 1, 1], [], []>} : vector<8x32xbf16>, vector<32x32xbf16>, vector<8x32xf32> -> vector<8x32xf32>
    %c0_59 = arith.constant 0 : index
    %122 = memref.load %arg15[%c0_59] : memref<2xf32, #tpu.memory_space<smem>>
    %c1 = arith.constant 1 : index
    %123 = memref.load %arg15[%c1] : memref<2xf32, #tpu.memory_space<smem>>
    %124 = vector.broadcast %122 : f32 to vector<8x32xf32>
    %125 = arith.mulf %124, %121 : vector<8x32xf32>
    %126 = arith.addf %1, %125 : vector<8x32xf32>
    %cst_60 = arith.constant dense<0.000000e+00> : vector<8xf32>
    %127 = vector.multi_reduction <add>, %126, %cst_60 [1] : vector<8x32xf32> to vector<8xf32>
    %128 = vector.shape_cast %127 : vector<8xf32> to vector<8x1xf32>
    %cst_61 = arith.constant 3.200000e+01 : f32
    %129 = vector.broadcast %cst_61 : f32 to vector<8x1xf32>
    %130 = arith.divf %128, %129 : vector<8x1xf32>
    %131 = vector.broadcast %130 : vector<8x1xf32> to vector<8x32xf32>
    %132 = arith.subf %126, %131 : vector<8x32xf32>
    %133 = vector.broadcast %130 : vector<8x1xf32> to vector<8x32xf32>
    %134 = arith.subf %126, %133 : vector<8x32xf32>
    %135 = arith.mulf %132, %134 : vector<8x32xf32>
    %cst_62 = arith.constant dense<0.000000e+00> : vector<8xf32>
    %136 = vector.multi_reduction <add>, %135, %cst_62 [1] : vector<8x32xf32> to vector<8xf32>
    %137 = vector.shape_cast %136 : vector<8xf32> to vector<8x1xf32>
    %cst_63 = arith.constant 3.200000e+01 : f32
    %138 = vector.broadcast %cst_63 : f32 to vector<8x1xf32>
    %139 = arith.divf %137, %138 : vector<8x1xf32>
    %140 = vector.broadcast %130 : vector<8x1xf32> to vector<8x32xf32>
    %141 = arith.subf %126, %140 : vector<8x32xf32>
    %cst_64 = arith.constant 9.99999974E-6 : f32
    %142 = vector.broadcast %cst_64 : f32 to vector<8x1xf32>
    %143 = arith.addf %139, %142 : vector<8x1xf32>
    %144 = math.rsqrt %143 : vector<8x1xf32>
    %145 = vector.broadcast %144 : vector<8x1xf32> to vector<8x32xf32>
    %146 = arith.mulf %141, %145 : vector<8x32xf32>
    %c0_65 = arith.constant 0 : index
    %c0_66 = arith.constant 0 : index
    %147 = vector.load %arg11[%c0_65, %c0_66] : memref<1x32xf32, #tpu.memory_space<vmem>>, vector<1x32xf32>
    %148 = vector.broadcast %147 : vector<1x32xf32> to vector<8x32xf32>
    %149 = arith.mulf %146, %148 : vector<8x32xf32>
    %c0_67 = arith.constant 0 : index
    %c0_68 = arith.constant 0 : index
    %150 = vector.load %arg12[%c0_67, %c0_68] : memref<1x32xf32, #tpu.memory_space<vmem>>, vector<1x32xf32>
    %151 = vector.broadcast %150 : vector<1x32xf32> to vector<8x32xf32>
    %152 = arith.addf %149, %151 : vector<8x32xf32>
    %153 = arith.truncf %152 : vector<8x32xf32> to vector<8x32xbf16>
    %c0_69 = arith.constant 0 : index
    %c0_70 = arith.constant 0 : index
    %154 = vector.load %arg13[%c0_69, %c0_70] : memref<32x128xbf16, #tpu.memory_space<vmem>>, vector<32x128xbf16>
    %cst_71 = arith.constant dense<0.000000e+00> : vector<8x128xf32>
    %155 = tpu.matmul %153, %154, %cst_71 {dimension_numbers = #tpu.dot_dimension_numbers<[1], [0], [0], [1], [0, 0, 1, 1], [], []>} : vector<8x32xbf16>, vector<32x128xbf16>, vector<8x128xf32> -> vector<8x128xf32>
    %cst_72 = arith.constant 5.000000e-01 : f32
    %156 = vector.broadcast %cst_72 : f32 to vector<8x128xf32>
    %157 = arith.mulf %156, %155 : vector<8x128xf32>
    %cst_73 = arith.constant 0.707106769 : f32
    %158 = vector.broadcast %cst_73 : f32 to vector<8x128xf32>
    %159 = arith.mulf %155, %158 : vector<8x128xf32>
    %cst_74 = arith.constant 0.000000e+00 : f32
    %160 = vector.broadcast %cst_74 : f32 to vector<8x128xf32>
    %161 = arith.cmpf oge, %159, %160 : vector<8x128xf32>
    %cst_75 = arith.constant 1.000000e+00 : f32
    %cst_76 = arith.constant -1.000000e+00 : f32
    %162 = vector.broadcast %cst_75 : f32 to vector<8x128xf32>
    %163 = vector.broadcast %cst_76 : f32 to vector<8x128xf32>
    %164 = arith.select %161, %162, %163 : vector<8x128xi1>, vector<8x128xf32>
    %165 = math.absf %159 : vector<8x128xf32>
    %cst_77 = arith.constant 0.327591091 : f32
    %166 = vector.broadcast %cst_77 : f32 to vector<8x128xf32>
    %167 = arith.mulf %166, %165 : vector<8x128xf32>
    %cst_78 = arith.constant 1.000000e+00 : f32
    %168 = vector.broadcast %cst_78 : f32 to vector<8x128xf32>
    %169 = arith.addf %168, %167 : vector<8x128xf32>
    %170 = tpu.reciprocal %169 {approx = true} : vector<8x128xf32> -> vector<8x128xf32>
    %cst_79 = arith.constant 1.06140542 : f32
    %171 = vector.broadcast %cst_79 : f32 to vector<8x128xf32>
    %172 = arith.mulf %171, %170 : vector<8x128xf32>
    %cst_80 = arith.constant -1.45315206 : f32
    %173 = vector.broadcast %cst_80 : f32 to vector<8x128xf32>
    %174 = arith.addf %172, %173 : vector<8x128xf32>
    %175 = arith.mulf %174, %170 : vector<8x128xf32>
    %cst_81 = arith.constant 1.42141378 : f32
    %176 = vector.broadcast %cst_81 : f32 to vector<8x128xf32>
    %177 = arith.addf %175, %176 : vector<8x128xf32>
    %178 = arith.mulf %177, %170 : vector<8x128xf32>
    %cst_82 = arith.constant -0.284496725 : f32
    %179 = vector.broadcast %cst_82 : f32 to vector<8x128xf32>
    %180 = arith.addf %178, %179 : vector<8x128xf32>
    %181 = arith.mulf %180, %170 : vector<8x128xf32>
    %cst_83 = arith.constant 0.254829586 : f32
    %182 = vector.broadcast %cst_83 : f32 to vector<8x128xf32>
    %183 = arith.addf %181, %182 : vector<8x128xf32>
    %184 = arith.mulf %183, %170 : vector<8x128xf32>
    %cst_84 = arith.constant 0.000000e+00 : f32
    %185 = vector.broadcast %cst_84 : f32 to vector<8x128xf32>
    %186 = arith.subf %185, %165 : vector<8x128xf32>
    %187 = arith.mulf %186, %165 : vector<8x128xf32>
    %188 = math.exp %187 : vector<8x128xf32>
    %189 = arith.mulf %184, %188 : vector<8x128xf32>
    %cst_85 = arith.constant 1.000000e+00 : f32
    %190 = vector.broadcast %cst_85 : f32 to vector<8x128xf32>
    %191 = arith.subf %190, %189 : vector<8x128xf32>
    %192 = arith.mulf %164, %191 : vector<8x128xf32>
    %cst_86 = arith.constant 1.000000e+00 : f32
    %193 = vector.broadcast %cst_86 : f32 to vector<8x128xf32>
    %194 = arith.addf %193, %192 : vector<8x128xf32>
    %195 = arith.mulf %157, %194 : vector<8x128xf32>
    %196 = arith.truncf %195 : vector<8x128xf32> to vector<8x128xbf16>
    %c0_87 = arith.constant 0 : index
    %c0_88 = arith.constant 0 : index
    %197 = vector.load %arg14[%c0_87, %c0_88] : memref<128x32xbf16, #tpu.memory_space<vmem>>, vector<128x32xbf16>
    %cst_89 = arith.constant dense<0.000000e+00> : vector<8x32xf32>
    %198 = tpu.matmul %196, %197, %cst_89 {dimension_numbers = #tpu.dot_dimension_numbers<[1], [0], [0], [1], [0, 0, 1, 1], [], []>} : vector<8x128xbf16>, vector<128x32xbf16>, vector<8x32xf32> -> vector<8x32xf32>
    %199 = vector.broadcast %123 : f32 to vector<8x32xf32>
    %200 = arith.mulf %199, %198 : vector<8x32xf32>
    %201 = arith.addf %126, %200 : vector<8x32xf32>
    %c0_90 = arith.constant 0 : index
    %c0_91 = arith.constant 0 : index
    %c0_92 = arith.constant 0 : index
    %202 = vector.load %arg16[%c0_90, %c0_91, %c0_92] : memref<1x8x32xf32, #tpu.memory_space<vmem>>, vector<1x8x32xf32>
    %203 = vector.shape_cast %202 : vector<1x8x32xf32> to vector<8x32xf32>
    %204 = vector.shape_cast %201 : vector<8x32xf32> to vector<1x8x32xf32>
    tpu.vector_store %arg16[%c0_90, %c0_91, %c0_92], %204 {strides = array<i32>} : memref<1x8x32xf32, #tpu.memory_space<vmem>>, vector<1x8x32xf32>,
    return
  }
  func.func @transform_0(%arg0: i32) -> (i32, i32, i32) {
    %c0_i32 = arith.constant 0 : i32
    %c0_i32_0 = arith.constant 0 : i32
    %c0_i32_1 = arith.constant 0 : i32
    return %arg0, %c0_i32, %c0_i32_0 : i32, i32, i32
  }
  func.func @transform_1(%arg0: i32) -> (i32, i32, i32) {
    %c0_i32 = arith.constant 0 : i32
    %c0_i32_0 = arith.constant 0 : i32
    %c0_i32_1 = arith.constant 0 : i32
    return %arg0, %c0_i32, %c0_i32_0 : i32, i32, i32
  }
  func.func @transform_2(%arg0: i32) -> (i32, i32, i32) {
    %c0_i32 = arith.constant 0 : i32
    %c0_i32_0 = arith.constant 0 : i32
    %c0_i32_1 = arith.constant 0 : i32
    return %arg0, %c0_i32, %c0_i32_0 : i32, i32, i32
  }
  func.func @transform_3(%arg0: i32) -> (i32, i32, i32) {
    %c0_i32 = arith.constant 0 : i32
    %c0_i32_0 = arith.constant 0 : i32
    %c0_i32_1 = arith.constant 0 : i32
    return %arg0, %c0_i32, %c0_i32_0 : i32, i32, i32
  }
  func.func @transform_4(%arg0: i32) -> (i32, i32) {
    %c0_i32 = arith.constant 0 : i32
    %c0_i32_0 = arith.constant 0 : i32
    %c0_i32_1 = arith.constant 0 : i32
    return %c0_i32, %c0_i32_0 : i32, i32
  }
  func.func @transform_5(%arg0: i32) -> (i32, i32) {
    %c0_i32 = arith.constant 0 : i32
    %c0_i32_0 = arith.constant 0 : i32
    %c0_i32_1 = arith.constant 0 : i32
    return %c0_i32, %c0_i32_0 : i32, i32
  }
  func.func @transform_6(%arg0: i32) -> (i32, i32) {
    %c0_i32 = arith.constant 0 : i32
    %c0_i32_0 = arith.constant 0 : i32
    %c0_i32_1 = arith.constant 0 : i32
    return %c0_i32, %c0_i32_0 : i32, i32
  }
  func.func @transform_7(%arg0: i32) -> (i32, i32) {
    %c0_i32 = arith.constant 0 : i32
    %c0_i32_0 = arith.constant 0 : i32
    %c0_i32_1 = arith.constant 0 : i32
    return %c0_i32, %c0_i32_0 : i32, i32
  }
  func.func @transform_8(%arg0: i32) -> (i32, i32) {
    %c0_i32 = arith.constant 0 : i32
    %c0_i32_0 = arith.constant 0 : i32
    %c0_i32_1 = arith.constant 0 : i32
    return %c0_i32, %c0_i32_0 : i32, i32
  }
  func.func @transform_9(%arg0: i32) -> (i32, i32) {
    %c0_i32 = arith.constant 0 : i32
    %c0_i32_0 = arith.constant 0 : i32
    %c0_i32_1 = arith.constant 0 : i32
    return %c0_i32, %c0_i32_0 : i32, i32
  }
  func.func @transform_10(%arg0: i32) -> (i32, i32) {
    %c0_i32 = arith.constant 0 : i32
    %c0_i32_0 = arith.constant 0 : i32
    %c0_i32_1 = arith.constant 0 : i32
    return %c0_i32, %c0_i32_0 : i32, i32
  }
  func.func @transform_11(%arg0: i32) -> (i32, i32) {
    %c0_i32 = arith.constant 0 : i32
    %c0_i32_0 = arith.constant 0 : i32
    %c0_i32_1 = arith.constant 0 : i32
    return %c0_i32, %c0_i32_0 : i32, i32
  }
  func.func @transform_12(%arg0: i32) -> (i32, i32) {
    %c0_i32 = arith.constant 0 : i32
    %c0_i32_0 = arith.constant 0 : i32
    %c0_i32_1 = arith.constant 0 : i32
    return %c0_i32, %c0_i32_0 : i32, i32
  }
  func.func @transform_13(%arg0: i32) -> (i32, i32) {
    %c0_i32 = arith.constant 0 : i32
    %c0_i32_0 = arith.constant 0 : i32
    %c0_i32_1 = arith.constant 0 : i32
    return %c0_i32, %c0_i32_0 : i32, i32
  }
  func.func @transform_14(%arg0: i32) -> i32 {
    %c0_i32 = arith.constant 0 : i32
    %c0_i32_0 = arith.constant 0 : i32
    return %c0_i32 : i32
  }
  func.func @transform_15(%arg0: i32) -> (i32, i32, i32) {
    %c0_i32 = arith.constant 0 : i32
    %c0_i32_0 = arith.constant 0 : i32
    %c0_i32_1 = arith.constant 0 : i32
    return %arg0, %c0_i32, %c0_i32_0 : i32, i32, i32
  }
}

</mosaic_0001>

<llo_original>
// kernel: branch_1_fun.1
$region0: #{branch_1_fun.1}
  #allocation0 [shape = 'u32[]', space=smem, size = 0x4, offset = 0x4, fixed_abs, tag = 'smem constant byte address 0x4 - core index']
  #allocation1 [shape = 'u32[144,128]{1,0:T(1,128)}', space=vmem, size = 0x12000, scoped, tag = 'internal scratch']
  #allocation2 [shape = 'f32[8,32]{1,0:T(8,128)}', space=vmem, size = 0x1000, scoped, tag = 'scratch operand']
  %s0 = inlined_call_operand.vmem [shape: f32[2,8,32], index: 0, kind: input, shape index: {}]
  %s1 = inlined_call_operand.vmem [shape: f32[2,16,48], index: 1, kind: input, shape index: {}]
  %s2 = inlined_call_operand.vmem [shape: f32[2,8,1], index: 2, kind: input, shape index: {}]
  %s3 = inlined_call_operand.vmem [shape: f32[2,1,16], index: 3, kind: input, shape index: {}]
  %s4 = inlined_call_operand.vmem [shape: f32[1,32], index: 4, kind: input, shape index: {}]
  %s5 = inlined_call_operand.vmem [shape: bf16[32,32], index: 5, kind: input, shape index: {}]
  %s6 = inlined_call_operand.vmem [shape: f32[1,32], index: 6, kind: input, shape index: {}]
  %s7 = inlined_call_operand.vmem [shape: bf16[48,64], index: 7, kind: input, shape index: {}]
  %s8 = inlined_call_operand.vmem [shape: f32[1,64], index: 8, kind: input, shape index: {}]
  %s9 = inlined_call_operand.vmem [shape: bf16[32,32], index: 9, kind: input, shape index: {}]
  %s10 = inlined_call_operand.vmem [shape: f32[1,32], index: 10, kind: input, shape index: {}]
  %s11 = inlined_call_operand.vmem [shape: f32[1,32], index: 11, kind: input, shape index: {}]
  %s12 = inlined_call_operand.vmem [shape: bf16[32,128], index: 12, kind: input, shape index: {}]
  %s13 = inlined_call_operand.vmem [shape: bf16[128,32], index: 13, kind: input, shape index: {}]
  %s14 = inlined_call_operand.vmem [shape: f32[2], index: 14, kind: input, shape index: {}]
  %s15 = inlined_call_operand.hbm [shape: f32[2,8,32], index: 15, kind: output, shape index: {}]
  %s16 = sld [smem:[#allocation0]]
  $region97: #{branch_1_fun.1} parent=0
    _
  %s18 = ssub.s32 1, %s16
  %s19 = scalar_select 0, %s18, %s16
  $region1: #{branch_1_fun.1} parent=0
    #allocation3 [shape = 'u8[512]{0}', space=smem, size = 0x200, scoped, tag = 'input window, operand 14, single buffered']
    #allocation4 [shape = 's32[2]{0}', space=sflag, size = 0x8, scoped, tag = 'scoped memory for branch_1_fun.1']
    #allocation5 [shape = 's32[2]{0}', space=sflag, size = 0x8, scoped, tag = 'scoped memory for branch_1_fun.1']
    #allocation6 [shape = 'u8[8192]{0}', space=vmem, size = 0x2000, scoped, tag = 'output window, operand 0']
    %20 = vsyncpa [#allocation5], 0
    %21 = vsyncpa [#allocation4], 0
    %s22 = scalar_lea.sflag [#allocation4], 1
    %23 = vsyncpa %s22, 0
    loop: start=0, step=1, limit=4
    $region2: #{branch_1_fun.1} parent=1 // loop_pre_header
      _
    $region3: #{branch_1_fun.1} parent=1 // loop_header
      %s25 = sphi 0, %s29
      %p26 = scmp.ge.s32.totalorder %s25, 4
      %s35 = sphi 0, %s37
      %s38 = sphi 0, %s35
      %s39 = sphi 0, %s38
      %s55 = sphi 0, %s39
      %s61 = sphi 0, %s63
      %s64 = sphi 0, %s61
      %s65 = sphi 0, %s64
      %s81 = sphi 0, %s65
      %s87 = sphi 0, %s89
      %s90 = sphi 0, %s87
      %s91 = sphi 0, %s90
      %s107 = sphi 0, %s91
      %s113 = sphi 0, %s115
      %s116 = sphi 0, %s113
      %s117 = sphi 0, %s116
      %s133 = sphi 0, %s117
      %s137 = sphi 0, %s137
      %s139 = sphi 0, %s137
      %s140 = sphi 0, %s139
      %s154 = sphi 0, %s140
      %s158 = sphi 0, %s158
      %s160 = sphi 0, %s158
      %s161 = sphi 0, %s160
      %s175 = sphi 0, %s161
      %s179 = sphi 0, %s179
      %s181 = sphi 0, %s179
      %s182 = sphi 0, %s181
      %s196 = sphi 0, %s182
      %s200 = sphi 0, %s200
      %s202 = sphi 0, %s200
      %s203 = sphi 0, %s202
      %s217 = sphi 0, %s203
      %s221 = sphi 0, %s221
      %s223 = sphi 0, %s221
      %s224 = sphi 0, %s223
      %s238 = sphi 0, %s224
      %s242 = sphi 0, %s242
      %s244 = sphi 0, %s242
      %s245 = sphi 0, %s244
      %s259 = sphi 0, %s245
      %s263 = sphi 0, %s263
      %s265 = sphi 0, %s263
      %s266 = sphi 0, %s265
      %s280 = sphi 0, %s266
      %s284 = sphi 0, %s284
      %s286 = sphi 0, %s284
      %s287 = sphi 0, %s286
      %s301 = sphi 0, %s287
      %s305 = sphi 0, %s305
      %s307 = sphi 0, %s305
      %s308 = sphi 0, %s307
      %s322 = sphi 0, %s308
      %s326 = sphi 0, %s326
      %s328 = sphi 0, %s326
      %s329 = sphi 0, %s328
      %s343 = sphi 0, %s329
      %s347 = sphi 0, %s347
      %s349 = sphi 0, %s347
      %s350 = sphi 0, %s349
      %s364 = sphi 0, %s350
      %s370 = sphi 0, %s372
      %s373 = sphi 0, %s370
      %s374 = sphi 0, %s373
      %s390 = sphi 0, %s374
    $region4: #{branch_1_fun.1} parent=1 // loop_header_branch
      %28 = sbr.rel (%p26) target = $region8
    $region5: #{branch_1_fun.1} parent=1 // loop_body
      %s30 = ssub.s32 %s25, 1
      %s31 = ssub.s32 %s25, 2
      %s32 = sadd.s32 %s25, 1
      %s33 = ssub.s32 %s25, %s32
      %p34 = scmp.eq.s32.totalorder %s33, 0
      %s36 = sadd.s32 %s35, 1
      %s37 = scalar_select %p34, %s35, %s36
      %p40 = pneg %p34
      %p41 = scmp.eq.s32.totalorder %s25, 1
      %p42 = por %p40, %p41
      %p43 = scmp.ne.s32.totalorder %s35, %s38
      %p44 = scmp.eq.s32.totalorder %s25, 0
      %p45 = por %p43, %p44
      %p46 = scmp.ne.s32.totalorder %s35, %s38
      %p47 = scmp.eq.s32.totalorder %s30, 1
      %p48 = por %p46, %p47
      %p49 = scmp.ne.s32.totalorder %s38, %s39
      %p50 = scmp.eq.s32.totalorder %s30, 0
      %p51 = por %p49, %p50
      %p52 = scmp.ne.s32.totalorder %s38, %s39
      %p53 = scmp.eq.s32.totalorder %s31, 1
      %p54 = por %p52, %p53
      %p56 = scmp.ne.s32.totalorder %s39, %s55
      %p57 = scmp.eq.s32.totalorder %s31, 0
      %p58 = por %p56, %p57
      %s59 = ssub.s32 %s25, %s32
      %p60 = scmp.eq.s32.totalorder %s59, 0
      %s62 = sadd.s32 %s61, 1
      %s63 = scalar_select %p60, %s61, %s62
      %p66 = pneg %p60
      %p67 = scmp.eq.s32.totalorder %s25, 1
      %p68 = por %p66, %p67
      %p69 = scmp.ne.s32.totalorder %s61, %s64
      %p70 = scmp.eq.s32.totalorder %s25, 0
      %p71 = por %p69, %p70
      %p72 = scmp.ne.s32.totalorder %s61, %s64
      %p73 = scmp.eq.s32.totalorder %s30, 1
      %p74 = por %p72, %p73
      %p75 = scmp.ne.s32.totalorder %s64, %s65
      %p76 = scmp.eq.s32.totalorder %s30, 0
      %p77 = por %p75, %p76
      %p78 = scmp.ne.s32.totalorder %s64, %s65
      %p79 = scmp.eq.s32.totalorder %s31, 1
      %p80 = por %p78, %p79
      %p82 = scmp.ne.s32.totalorder %s65, %s81
      %p83 = scmp.eq.s32.totalorder %s31, 0
      %p84 = por %p82, %p83
      %s85 = ssub.s32 %s25, %s32
      %p86 = scmp.eq.s32.totalorder %s85, 0
      %s88 = sadd.s32 %s87, 1
      %s89 = scalar_select %p86, %s87, %s88
      %p92 = pneg %p86
      %p93 = scmp.eq.s32.totalorder %s25, 1
      %p94 = por %p92, %p93
      %p95 = scmp.ne.s32.totalorder %s87, %s90
      %p96 = scmp.eq.s32.totalorder %s25, 0
      %p97 = por %p95, %p96
      %p98 = scmp.ne.s32.totalorder %s87, %s90
      %p99 = scmp.eq.s32.totalorder %s30, 1
      %p100 = por %p98, %p99
      %p101 = scmp.ne.s32.totalorder %s90, %s91
      %p102 = scmp.eq.s32.totalorder %s30, 0
      %p103 = por %p101, %p102
      %p104 = scmp.ne.s32.totalorder %s90, %s91
      %p105 = scmp.eq.s32.totalorder %s31, 1
      %p106 = por %p104, %p105
      %p108 = scmp.ne.s32.totalorder %s91, %s107
      %p109 = scmp.eq.s32.totalorder %s31, 0
      %p110 = por %p108, %p109
      %s111 = ssub.s32 %s25, %s32
      %p112 = scmp.eq.s32.totalorder %s111, 0
      %s114 = sadd.s32 %s113, 1
      %s115 = scalar_select %p112, %s113, %s114
      %p118 = pneg %p112
      %p119 = scmp.eq.s32.totalorder %s25, 1
      %p120 = por %p118, %p119
      %p121 = scmp.ne.s32.totalorder %s113, %s116
      %p122 = scmp.eq.s32.totalorder %s25, 0
      %p123 = por %p121, %p122
      %p124 = scmp.ne.s32.totalorder %s113, %s116
      %p125 = scmp.eq.s32.totalorder %s30, 1
      %p126 = por %p124, %p125
      %p127 = scmp.ne.s32.totalorder %s116, %s117
      %p128 = scmp.eq.s32.totalorder %s30, 0
      %p129 = por %p127, %p128
      %p130 = scmp.ne.s32.totalorder %s116, %s117
      %p131 = scmp.eq.s32.totalorder %s31, 1
      %p132 = por %p130, %p131
      %p134 = scmp.ne.s32.totalorder %s117, %s133
      %p135 = scmp.eq.s32.totalorder %s31, 0
      %p136 = por %p134, %p135
      %s138 = sadd.s32 %s137, 1
      %p141 = scmp.eq.s32.totalorder %s25, 1
      %p142 = scmp.ne.s32.totalorder %s137, %s139
      %p143 = scmp.eq.s32.totalorder %s25, 0
      %p144 = por %p142, %p143
      %p145 = scmp.ne.s32.totalorder %s137, %s139
      %p146 = scmp.eq.s32.totalorder %s30, 1
      %p147 = por %p145, %p146
      %p148 = scmp.ne.s32.totalorder %s139, %s140
      %p149 = scmp.eq.s32.totalorder %s30, 0
      %p150 = por %p148, %p149
      %p151 = scmp.ne.s32.totalorder %s139, %s140
      %p152 = scmp.eq.s32.totalorder %s31, 1
      %p153 = por %p151, %p152
      %p155 = scmp.ne.s32.totalorder %s140, %s154
      %p156 = scmp.eq.s32.totalorder %s31, 0
      %p157 = por %p155, %p156
      %s159 = sadd.s32 %s158, 1
      %p162 = scmp.eq.s32.totalorder %s25, 1
      %p163 = scmp.ne.s32.totalorder %s158, %s160
      %p164 = scmp.eq.s32.totalorder %s25, 0
      %p165 = por %p163, %p164
      %p166 = scmp.ne.s32.totalorder %s158, %s160
      %p167 = scmp.eq.s32.totalorder %s30, 1
      %p168 = por %p166, %p167
      %p169 = scmp.ne.s32.totalorder %s160, %s161
      %p170 = scmp.eq.s32.totalorder %s30, 0
      %p171 = por %p169, %p170
      %p172 = scmp.ne.s32.totalorder %s160, %s161
      %p173 = scmp.eq.s32.totalorder %s31, 1
      %p174 = por %p172, %p173
      %p176 = scmp.ne.s32.totalorder %s161, %s175
      %p177 = scmp.eq.s32.totalorder %s31, 0
      %p178 = por %p176, %p177
      %s180 = sadd.s32 %s179, 1
      %p183 = scmp.eq.s32.totalorder %s25, 1
      %p184 = scmp.ne.s32.totalorder %s179, %s181
      %p185 = scmp.eq.s32.totalorder %s25, 0
      %p186 = por %p184, %p185
      %p187 = scmp.ne.s32.totalorder %s179, %s181
      %p188 = scmp.eq.s32.totalorder %s30, 1
      %p189 = por %p187, %p188
      %p190 = scmp.ne.s32.totalorder %s181, %s182
      %p191 = scmp.eq.s32.totalorder %s30, 0
      %p192 = por %p190, %p191
      %p193 = scmp.ne.s32.totalorder %s181, %s182
      %p194 = scmp.eq.s32.totalorder %s31, 1
      %p195 = por %p193, %p194
      %p197 = scmp.ne.s32.totalorder %s182, %s196
      %p198 = scmp.eq.s32.totalorder %s31, 0
      %p199 = por %p197, %p198
      %s201 = sadd.s32 %s200, 1
      %p204 = scmp.eq.s32.totalorder %s25, 1
      %p205 = scmp.ne.s32.totalorder %s200, %s202
      %p206 = scmp.eq.s32.totalorder %s25, 0
      %p207 = por %p205, %p206
      %p208 = scmp.ne.s32.totalorder %s200, %s202
      %p209 = scmp.eq.s32.totalorder %s30, 1
      %p210 = por %p208, %p209
      %p211 = scmp.ne.s32.totalorder %s202, %s203
      %p212 = scmp.eq.s32.totalorder %s30, 0
      %p213 = por %p211, %p212
      %p214 = scmp.ne.s32.totalorder %s202, %s203
      %p215 = scmp.eq.s32.totalorder %s31, 1
      %p216 = por %p214, %p215
      %p218 = scmp.ne.s32.totalorder %s203, %s217
      %p219 = scmp.eq.s32.totalorder %s31, 0
      %p220 = por %p218, %p219
      %s222 = sadd.s32 %s221, 1
      %p225 = scmp.eq.s32.totalorder %s25, 1
      %p226 = scmp.ne.s32.totalorder %s221, %s223
      %p227 = scmp.eq.s32.totalorder %s25, 0
      %p228 = por %p226, %p227
      %p229 = scmp.ne.s32.totalorder %s221, %s223
      %p230 = scmp.eq.s32.totalorder %s30, 1
      %p231 = por %p229, %p230
      %p232 = scmp.ne.s32.totalorder %s223, %s224
      %p233 = scmp.eq.s32.totalorder %s30, 0
      %p234 = por %p232, %p233
      %p235 = scmp.ne.s32.totalorder %s223, %s224
      %p236 = scmp.eq.s32.totalorder %s31, 1
      %p237 = por %p235, %p236
      %p239 = scmp.ne.s32.totalorder %s224, %s238
      %p240 = scmp.eq.s32.totalorder %s31, 0
      %p241 = por %p239, %p240
      %s243 = sadd.s32 %s242, 1
      %p246 = scmp.eq.s32.totalorder %s25, 1
      %p247 = scmp.ne.s32.totalorder %s242, %s244
      %p248 = scmp.eq.s32.totalorder %s25, 0
      %p249 = por %p247, %p248
      %p250 = scmp.ne.s32.totalorder %s242, %s244
      %p251 = scmp.eq.s32.totalorder %s30, 1
      %p252 = por %p250, %p251
      %p253 = scmp.ne.s32.totalorder %s244, %s245
      %p254 = scmp.eq.s32.totalorder %s30, 0
      %p255 = por %p253, %p254
      %p256 = scmp.ne.s32.totalorder %s244, %s245
      %p257 = scmp.eq.s32.totalorder %s31, 1
      %p258 = por %p256, %p257
      %p260 = scmp.ne.s32.totalorder %s245, %s259
      %p261 = scmp.eq.s32.totalorder %s31, 0
      %p262 = por %p260, %p261
      %s264 = sadd.s32 %s263, 1
      %p267 = scmp.eq.s32.totalorder %s25, 1
      %p268 = scmp.ne.s32.totalorder %s263, %s265
      %p269 = scmp.eq.s32.totalorder %s25, 0
      %p270 = por %p268, %p269
      %p271 = scmp.ne.s32.totalorder %s263, %s265
      %p272 = scmp.eq.s32.totalorder %s30, 1
      %p273 = por %p271, %p272
      %p274 = scmp.ne.s32.totalorder %s265, %s266
      %p275 = scmp.eq.s32.totalorder %s30, 0
      %p276 = por %p274, %p275
      %p277 = scmp.ne.s32.totalorder %s265, %s266
      %p278 = scmp.eq.s32.totalorder %s31, 1
      %p279 = por %p277, %p278
      %p281 = scmp.ne.s32.totalorder %s266, %s280
      %p282 = scmp.eq.s32.totalorder %s31, 0
      %p283 = por %p281, %p282
      %s285 = sadd.s32 %s284, 1
      %p288 = scmp.eq.s32.totalorder %s25, 1
      %p289 = scmp.ne.s32.totalorder %s284, %s286
      %p290 = scmp.eq.s32.totalorder %s25, 0
      %p291 = por %p289, %p290
      %p292 = scmp.ne.s32.totalorder %s284, %s286
      %p293 = scmp.eq.s32.totalorder %s30, 1
      %p294 = por %p292, %p293
      %p295 = scmp.ne.s32.totalorder %s286, %s287
      %p296 = scmp.eq.s32.totalorder %s30, 0
      %p297 = por %p295, %p296
      %p298 = scmp.ne.s32.totalorder %s286, %s287
      %p299 = scmp.eq.s32.totalorder %s31, 1
      %p300 = por %p298, %p299
      %p302 = scmp.ne.s32.totalorder %s287, %s301
      %p303 = scmp.eq.s32.totalorder %s31, 0
      %p304 = por %p302, %p303
      %s306 = sadd.s32 %s305, 1
      %p309 = scmp.eq.s32.totalorder %s25, 1
      %p310 = scmp.ne.s32.totalorder %s305, %s307
      %p311 = scmp.eq.s32.totalorder %s25, 0
      %p312 = por %p310, %p311
      %p313 = scmp.ne.s32.totalorder %s305, %s307
      %p314 = scmp.eq.s32.totalorder %s30, 1
      %p315 = por %p313, %p314
      %p316 = scmp.ne.s32.totalorder %s307, %s308
      %p317 = scmp.eq.s32.totalorder %s30, 0
      %p318 = por %p316, %p317
      %p319 = scmp.ne.s32.totalorder %s307, %s308
      %p320 = scmp.eq.s32.totalorder %s31, 1
      %p321 = por %p319, %p320
      %p323 = scmp.ne.s32.totalorder %s308, %s322
      %p324 = scmp.eq.s32.totalorder %s31, 0
      %p325 = por %p323, %p324
      %s327 = sadd.s32 %s326, 1
      %p330 = scmp.eq.s32.totalorder %s25, 1
      %p331 = scmp.ne.s32.totalorder %s326, %s328
      %p332 = scmp.eq.s32.totalorder %s25, 0
      %p333 = por %p331, %p332
      %p334 = scmp.ne.s32.totalorder %s326, %s328
      %p335 = scmp.eq.s32.totalorder %s30, 1
      %p336 = por %p334, %p335
      %p337 = scmp.ne.s32.totalorder %s328, %s329
      %p338 = scmp.eq.s32.totalorder %s30, 0
      %p339 = por %p337, %p338
      %p340 = scmp.ne.s32.totalorder %s328, %s329
      %p341 = scmp.eq.s32.totalorder %s31, 1
      %p342 = por %p340, %p341
      %p344 = scmp.ne.s32.totalorder %s329, %s343
      %p345 = scmp.eq.s32.totalorder %s31, 0
      %p346 = por %p344, %p345
      %s348 = sadd.s32 %s347, 1
      %p351 = scmp.eq.s32.totalorder %s25, 1
      %p352 = scmp.ne.s32.totalorder %s347, %s349
      %p353 = scmp.eq.s32.totalorder %s25, 0
      %p354 = por %p352, %p353
      %p355 = scmp.ne.s32.totalorder %s347, %s349
      %p356 = scmp.eq.s32.totalorder %s30, 1
      %p357 = por %p355, %p356
      %p358 = scmp.ne.s32.totalorder %s349, %s350
      %p359 = scmp.eq.s32.totalorder %s30, 0
      %p360 = por %p358, %p359
      %p361 = scmp.ne.s32.totalorder %s349, %s350
      %p362 = scmp.eq.s32.totalorder %s31, 1
      %p363 = por %p361, %p362
      %p365 = scmp.ne.s32.totalorder %s350, %s364
      %p366 = scmp.eq.s32.totalorder %s31, 0
      %p367 = por %p365, %p366
      %s368 = ssub.s32 %s25, %s32
      %p369 = scmp.eq.s32.totalorder %s368, 0
      %s371 = sadd.s32 %s370, 1
      %s372 = scalar_select %p369, %s370, %s371
      %p375 = pneg %p369
      %p376 = scmp.eq.s32.totalorder %s25, 1
      %p377 = por %p375, %p376
      %p378 = scmp.ne.s32.totalorder %s370, %s373
      %p379 = scmp.eq.s32.totalorder %s25, 0
      %p380 = por %p378, %p379
      %p381 = scmp.ne.s32.totalorder %s370, %s373
      %p382 = scmp.eq.s32.totalorder %s30, 1
      %p383 = por %p381, %p382
      %p384 = scmp.ne.s32.totalorder %s373, %s374
      %p385 = scmp.eq.s32.totalorder %s30, 0
      %p386 = por %p384, %p385
      %p387 = scmp.ne.s32.totalorder %s373, %s374
      %p388 = scmp.eq.s32.totalorder %s31, 1
      %p389 = por %p387, %p388
      %p391 = scmp.ne.s32.totalorder %s374, %s390
      %p392 = scmp.eq.s32.totalorder %s31, 0
      %p393 = por %p391, %p392
      %p394 = scmp.le.s32.totalorder 1, %s25
      %p395 = scmp.lt.s32.totalorder %s25, 3
      %p396 = pnand %p394, %p395
      %p397 = pneg %p396
      // Predicated region
      $region9: #{branch_1_fun.1} parent=5 // pred_check
        _
      $region10: #{branch_1_fun.1} parent=5 // pred_check_branch
        %399 = sbr.rel (%p396) target = $region12
      $region11: #{branch_1_fun.1} parent=5 // pred_region
        %s400 = ssub.s32 %s25, 1
        // Predicated region
        $region13: #{branch_1_fun.1} parent=11 // pred_check
          %p401 = pneg %p150
        $region14: #{branch_1_fun.1} parent=11 // pred_check_branch
          %403 = sbr.rel (%p401) target = $region16
        $region15: #{branch_1_fun.1} parent=11 // pred_region
          _
        $region16: #{branch_1_fun.1} parent=11 // pred_fallthru
          _
        // Predicated region
        $region17: #{branch_1_fun.1} parent=11 // pred_check
          %p404 = pneg %p171
        $region18: #{branch_1_fun.1} parent=11 // pred_check_branch
          %406 = sbr.rel (%p404) target = $region20
        $region19: #{branch_1_fun.1} parent=11 // pred_region
          _
        $region20: #{branch_1_fun.1} parent=11 // pred_fallthru
          _
        // Predicated region
        $region21: #{branch_1_fun.1} parent=11 // pred_check
          %p407 = pneg %p192
        $region22: #{branch_1_fun.1} parent=11 // pred_check_branch
          %409 = sbr.rel (%p407) target = $region24
        $region23: #{branch_1_fun.1} parent=11 // pred_region
          _
        $region24: #{branch_1_fun.1} parent=11 // pred_fallthru
          _
        // Predicated region
        $region25: #{branch_1_fun.1} parent=11 // pred_check
          %p410 = pneg %p213
        $region26: #{branch_1_fun.1} parent=11 // pred_check_branch
          %412 = sbr.rel (%p410) target = $region28
        $region27: #{branch_1_fun.1} parent=11 // pred_region
          _
        $region28: #{branch_1_fun.1} parent=11 // pred_fallthru
          _
        // Predicated region
        $region29: #{branch_1_fun.1} parent=11 // pred_check
          %p413 = pneg %p234
        $region30: #{branch_1_fun.1} parent=11 // pred_check_branch
          %415 = sbr.rel (%p413) target = $region32
        $region31: #{branch_1_fun.1} parent=11 // pred_region
          _
        $region32: #{branch_1_fun.1} parent=11 // pred_fallthru
          _
        // Predicated region
        $region33: #{branch_1_fun.1} parent=11 // pred_check
          %p416 = pneg %p255
        $region34: #{branch_1_fun.1} parent=11 // pred_check_branch
          %418 = sbr.rel (%p416) target = $region36
        $region35: #{branch_1_fun.1} parent=11 // pred_region
          _
        $region36: #{branch_1_fun.1} parent=11 // pred_fallthru
          _
        // Predicated region
        $region37: #{branch_1_fun.1} parent=11 // pred_check
          %p419 = pneg %p276
        $region38: #{branch_1_fun.1} parent=11 // pred_check_branch
          %421 = sbr.rel (%p419) target = $region40
        $region39: #{branch_1_fun.1} parent=11 // pred_region
          _
        $region40: #{branch_1_fun.1} parent=11 // pred_fallthru
          _
        // Predicated region
        $region41: #{branch_1_fun.1} parent=11 // pred_check
          %p422 = pneg %p297
        $region42: #{branch_1_fun.1} parent=11 // pred_check_branch
          %424 = sbr.rel (%p422) target = $region44
        $region43: #{branch_1_fun.1} parent=11 // pred_region
          _
        $region44: #{branch_1_fun.1} parent=11 // pred_fallthru
          _
        // Predicated region
        $region45: #{branch_1_fun.1} parent=11 // pred_check
          %p425 = pneg %p318
        $region46: #{branch_1_fun.1} parent=11 // pred_check_branch
          %427 = sbr.rel (%p425) target = $region48
        $region47: #{branch_1_fun.1} parent=11 // pred_region
          _
        $region48: #{branch_1_fun.1} parent=11 // pred_fallthru
          _
        // Predicated region
        $region49: #{branch_1_fun.1} parent=11 // pred_check
          %p428 = pneg %p339
        $region50: #{branch_1_fun.1} parent=11 // pred_check_branch
          %430 = sbr.rel (%p428) target = $region52
        $region51: #{branch_1_fun.1} parent=11 // pred_region
          _
        $region52: #{branch_1_fun.1} parent=11 // pred_fallthru
          _
        // Predicated region
        $region53: #{branch_1_fun.1} parent=11 // pred_check
          %p431 = pneg %p360
        $region54: #{branch_1_fun.1} parent=11 // pred_check_branch
          %433 = sbr.rel (%p431) target = $region56
        $region55: #{branch_1_fun.1} parent=11 // pred_region
          %s435 = ssub.s32 16, 16
          %436 = vsyncadd [#allocation5], %s435
          %s438 = sshll.u32 %s14, 4
          %s439 = int_to_ptr.vmem [resolvable:$true] %s438
          %441 = dma.vmem_to_smem %s439, 16, [#allocation3], [#allocation5]
        $region56: #{branch_1_fun.1} parent=11 // pred_fallthru
          _
      $region12: #{branch_1_fun.1} parent=5 // pred_fallthru
        _
      %p442 = scmp.lt.s32.totalorder %s25, 2
      // Predicated region
      $region57: #{branch_1_fun.1} parent=5 // pred_check
        %p443 = pneg %p442
      $region58: #{branch_1_fun.1} parent=5 // pred_check_branch
        %445 = sbr.rel (%p443) target = $region60
      $region59: #{branch_1_fun.1} parent=5 // pred_region
        // Predicated region
        $region61: #{branch_1_fun.1} parent=59 // pred_check
          %p446 = pneg %p45
        $region62: #{branch_1_fun.1} parent=59 // pred_check_branch
          %448 = sbr.rel (%p446) target = $region64
        $region63: #{branch_1_fun.1} parent=59 // pred_region
          %p449 = scmp.lt.s32.totalorder %s25, 1
          %s450 = scalar_select %p449, %s25, 1
          %s451 = smul.addr %s450, 8
          %s452 = scalar_lea.vmem %s0, %s451
        $region64: #{branch_1_fun.1} parent=59 // pred_fallthru
          _
        // Predicated region
        $region65: #{branch_1_fun.1} parent=59 // pred_check
          %p453 = pneg %p71
        $region66: #{branch_1_fun.1} parent=59 // pred_check_branch
          %455 = sbr.rel (%p453) target = $region68
        $region67: #{branch_1_fun.1} parent=59 // pred_region
          %p456 = scmp.lt.s32.totalorder %s25, 1
          %s457 = scalar_select %p456, %s25, 1
          %s458 = smul.addr %s457, 2
          %s459 = smul.addr %s458, 8
          %s460 = scalar_lea.vmem %s1, %s459
        $region68: #{branch_1_fun.1} parent=59 // pred_fallthru
          _
        // Predicated region
        $region69: #{branch_1_fun.1} parent=59 // pred_check
          %p461 = pneg %p97
        $region70: #{branch_1_fun.1} parent=59 // pred_check_branch
          %463 = sbr.rel (%p461) target = $region72
        $region71: #{branch_1_fun.1} parent=59 // pred_region
          %p464 = scmp.lt.s32.totalorder %s25, 1
          %s465 = scalar_select %p464, %s25, 1
          %s466 = smul.addr %s465, 8
          %s467 = scalar_lea.vmem %s2, %s466
        $region72: #{branch_1_fun.1} parent=59 // pred_fallthru
          _
        // Predicated region
        $region73: #{branch_1_fun.1} parent=59 // pred_check
          %p468 = pneg %p123
        $region74: #{branch_1_fun.1} parent=59 // pred_check_branch
          %470 = sbr.rel (%p468) target = $region76
        $region75: #{branch_1_fun.1} parent=59 // pred_region
          %p471 = scmp.lt.s32.totalorder %s25, 1
          %s472 = scalar_select %p471, %s25, 1
          %s473 = scalar_lea.vmem %s3, %s472
        $region76: #{branch_1_fun.1} parent=59 // pred_fallthru
          _
      $region60: #{branch_1_fun.1} parent=5 // pred_fallthru
        _
      %p474 = scmp.le.s32.totalorder 1, %s25
      %p475 = scmp.lt.s32.totalorder %s25, 3
      %p476 = pnand %p474, %p475
      %p477 = pneg %p476
      // Predicated region
      $region77: #{branch_1_fun.1} parent=5 // pred_check
        _
      $region78: #{branch_1_fun.1} parent=5 // pred_check_branch
        %479 = sbr.rel (%p476) target = $region80
      $region79: #{branch_1_fun.1} parent=5 // pred_region
        %s480 = ssub.s32 %s25, 1
        // Predicated region
        $region81: #{branch_1_fun.1} parent=79 // pred_check
          %p481 = pneg %p360
        $region82: #{branch_1_fun.1} parent=79 // pred_check_branch
          %483 = sbr.rel (%p481) target = $region84
        $region83: #{branch_1_fun.1} parent=79 // pred_region
          %484 = dma.done [#allocation5], 16
        $region84: #{branch_1_fun.1} parent=79 // pred_fallthru
          _
        %485 = sfence
        %p486 = scmp.lt.s32.totalorder %s30, 1
        %s487 = scalar_select %p486, %s30, 1
        %s488 = smul.addr %s487, 8
        %s489 = scalar_lea.vmem %s0, %s488
        %p490 = pneg %p51
        %p491 = pneg %p48
        %p492 = scmp.lt.s32.totalorder %s30, 1
        %s493 = scalar_select %p492, %s30, 1
        %s494 = smul.addr %s493, 2
        %s495 = smul.addr %s494, 8
        %s496 = scalar_lea.vmem %s1, %s495
        %p497 = pneg %p77
        %p498 = pneg %p74
        %p499 = scmp.lt.s32.totalorder %s30, 1
        %s500 = scalar_select %p499, %s30, 1
        %s501 = smul.addr %s500, 8
        %s502 = scalar_lea.vmem %s2, %s501
        %p503 = pneg %p103
        %p504 = pneg %p100
        %p505 = scmp.lt.s32.totalorder %s30, 1
        %s506 = scalar_select %p505, %s30, 1
        %s507 = scalar_lea.vmem %s3, %s506
        %p508 = pneg %p129
        %p509 = pneg %p126
        %p510 = pneg %p150
        %p511 = pneg %p147
        %p512 = pneg %p171
        %p513 = pneg %p168
        %p514 = pneg %p192
        %p515 = pneg %p189
        %p516 = pneg %p213
        %p517 = pneg %p210
        %p518 = pneg %p234
        %p519 = pneg %p231
        %p520 = pneg %p255
        %p521 = pneg %p252
        %p522 = pneg %p276
        %p523 = pneg %p273
        %p524 = pneg %p297
        %p525 = pneg %p294
        %p526 = pneg %p318
        %p527 = pneg %p315
        %p528 = pneg %p339
        %p529 = pneg %p336
        %p530 = pneg %p360
        %p531 = pneg %p357
        %p532 = pneg %p386
        %p533 = pneg %p383
        %s534 = sand.u32 %s373, 1
        %s535 = scalar_lea.sflag [#allocation4], %s534
        %s536 = sand.u32 %s373, 1
        %s537 = smul.addr %s536, 8
        %s538 = scalar_lea.vmem [#allocation6], %s537
        %p539 = scmp.lt.s32.totalorder %s30, 1
        %s540 = scalar_select %p539, %s30, 1
        %s541 = smul.addr %s540, 8
        %s542 = scalar_lea.vmem %s0, %s541
        %p543 = scmp.lt.s32.totalorder %s30, 1
        %s544 = scalar_select %p543, %s30, 1
        %s545 = smul.addr %s544, 2
        %s546 = smul.addr %s545, 8
        %s547 = scalar_lea.vmem %s1, %s546
        %p548 = scmp.lt.s32.totalorder %s30, 1
        %s549 = scalar_select %p548, %s30, 1
        %s550 = smul.addr %s549, 8
        %s551 = scalar_lea.vmem %s2, %s550
        %p552 = scmp.lt.s32.totalorder %s30, 1
        %s553 = scalar_select %p552, %s30, 1
        %s554 = scalar_lea.vmem %s3, %s553
        %v556 = vld [vmem:[%s542] sm:$0xff]
        %v557 = vld [vmem:[%s547] sm:$0xff]
        %v558 = vld [vmem:[%s547 + $0x8] sm:$0xff]
        %v559 = vld [vmem:[%s551] sm:$0xff]
        %v560 = vld [vmem:[%s554] sm:$0x1]
        %v561 = vmul.f32 %v556, %v556
        %vm562 = vcmask 261120
        %v563 = vsel %vm562, %v561, 0.0
        %564 = vadd.xlane.f32.xlu0 %v563
        %v565 = vpop.xlane.xlu0 %564
        %v566 = vrcp.pop 32.0
        %v567 = vmul.f32 %v565, %v566
        %v568 = vadd.f32 %v567, 1e-06
        %v569 = vrsqrt.pop %v568
        %v570 = vmul.f32 %v556, %v569
        %v571 = vld [vmem:[%s4] sm:$0x1]
        %v573 = vlaneseq
        %v574 = vshrl.u32 %v573, 7
        %v575 = vsub.s32 0, %v574
        %v576 = vrot.slane %v571, %v575
        %v578 = vmul.f32 %v570, %v576
        %v579 = vpack.c.bf16 %v578, %v578
        %v580 = vld [vmem:[%s5] sm:$0xf]
        %v581 = vld [vmem:[%s5 + $0x4] sm:$0xf]
        %v582 = vld [vmem:[%s5 + $0x8] sm:$0xf]
        %v583 = vld [vmem:[%s5 + $0xc] sm:$0xf]
        %v584 = vld [vmem:[%s6] sm:$0x1]
        %v586 = vlaneseq
        %v587 = vshrl.u32 %v586, 7
        %v588 = vsub.s32 0, %v587
        %v589 = vrot.slane %v584, %v588
        %v595 = vunpack.c.l.b16 %v580
        %v596 = vunpack.c.l.b16 %v581
        %v597 = vunpack.c.l.b16 %v582
        %v598 = vunpack.c.l.b16 %v583
        %v599 = vpack.c.b16 %v596, %v595
        %v600 = vpack.c.b16 %v598, %v597
        %v604 = vsel %vm562, %v579, 0
        %606 = vmatprep.subr.bf16.mxu0 0
        %607 = vmatpush1.bf16.msra.mxu0 0
        %608 = vmatprep.subr.bf16.mxu0 0
        %609 = vmatpush1.bf16.msra.mxu0 0
        %610 = vmatprep.subr.bf16.mxu0 0
        %611 = vmatpush1.bf16.msra.mxu0 0
        %612 = vmatprep.subr.bf16.mxu0 0
        %613 = vmatpush1.bf16.msra.mxu0 0
        %614 = vmatprep.subr.bf16.mxu0 0
        %615 = vmatpush1.bf16.msra.mxu0 0
        %616 = vmatprep.subr.bf16.mxu0 0
        %617 = vmatpush1.bf16.msra.mxu0 0
        %618 = vmatprep.subr.bf16.mxu0 0
        %619 = vmatpush1.bf16.msra.mxu0 %v600
        %620 = vmatprep.subr.bf16.mxu0 0
        %621 = vmatpush1.bf16.msra.mxu0 %v599
        %622 = vmatprep.subr.bf16.mxu0 0
        %623 = vmatpush2.bf16.msra.mxu0 0
        %624 = vmatprep.subr.bf16.mxu0 0
        %625 = vmatpush2.bf16.msra.mxu0 0
        %626 = vmatprep.subr.bf16.mxu0 0
        %627 = vmatpush2.bf16.msra.mxu0 0
        %628 = vmatprep.subr.bf16.mxu0 0
        %629 = vmatpush2.bf16.msra.mxu0 0
        %630 = vmatprep.subr.bf16.mxu0 0
        %631 = vmatpush2.bf16.msra.mxu0 0
        %632 = vmatprep.subr.bf16.mxu0 0
        %633 = vmatpush2.bf16.msra.mxu0 0
        %634 = vmatprep.subr.bf16.mxu0 0
        %635 = vmatpush2.bf16.msra.mxu0 0
        %636 = vmatprep.subr.bf16.mxu0 0
        %637 = vmatpush2.bf16.msra.mxu0 0
        %638 = vmatprep.mubr.bf16.mxu0 0
        %639 = vmatmul.mubr.bf16.gmra.mxu0 %v604
        %v640 = vpop.f32.mrf.mxu0
        %v641 = vadd.f32 %v589, %v640
        %v642 = vpop.f32.mrf.mxu0
        %v643 = vpop.f32.mrf.mxu0
        %v644 = vpop.f32.mrf.mxu0
        %645 = vdwg.mxu0
        %v646 = vpack.c.bf16 %v558, %v557
        %v647 = vld [vmem:[%s7] sm:$0xf]
        %v648 = vld [vmem:[%s7 + $0x4] sm:$0xf]
        %v649 = vld [vmem:[%s7 + $0x8] sm:$0xf]
        %v650 = vld [vmem:[%s7 + $0xc] sm:$0xf]
        %v651 = vld [vmem:[%s7 + $0x10] sm:$0xf]
        %v652 = vld [vmem:[%s7 + $0x14] sm:$0xf]
        %v653 = vld [vmem:[%s8] sm:$0x1]
        %v655 = vlaneseq
        %v656 = vshrl.u32 %v655, 7
        %v657 = vsub.s32 0, %v656
        %v658 = vrot.slane %v653, %v657
        %v666 = vunpack.c.l.b16 %v647
        %v667 = vunpack.c.l.b16 %v648
        %v668 = vunpack.c.l.b16 %v649
        %v669 = vunpack.c.l.b16 %v650
        %v670 = vunpack.c.l.b16 %v651
        %v671 = vunpack.c.l.b16 %v652
        %v672 = vpack.c.b16 %v667, %v666
        %v673 = vpack.c.b16 %v669, %v668
        %v674 = vpack.c.b16 %v671, %v670
        %vm678 = vcmask 392192
        %v680 = vsel %vm678, %v646, 0
        %682 = vmatprep.subr.bf16.mxu0 0
        %683 = vmatpush1.bf16.msra.mxu0 0
        %684 = vmatprep.subr.bf16.mxu0 0
        %685 = vmatpush1.bf16.msra.mxu0 0
        %686 = vmatprep.subr.bf16.mxu0 0
        %687 = vmatpush1.bf16.msra.mxu0 0
        %688 = vmatprep.subr.bf16.mxu0 0
        %689 = vmatpush1.bf16.msra.mxu0 0
        %690 = vmatprep.subr.bf16.mxu0 0
        %691 = vmatpush1.bf16.msra.mxu0 0
        %692 = vmatprep.subr.bf16.mxu0 0
        %693 = vmatpush1.bf16.msra.mxu0 %v674
        %694 = vmatprep.subr.bf16.mxu0 0
        %695 = vmatpush1.bf16.msra.mxu0 %v673
        %696 = vmatprep.subr.bf16.mxu0 0
        %697 = vmatpush1.bf16.msra.mxu0 %v672
        %698 = vmatprep.subr.bf16.mxu0 0
        %699 = vmatpush2.bf16.msra.mxu0 0
        %700 = vmatprep.subr.bf16.mxu0 0
        %701 = vmatpush2.bf16.msra.mxu0 0
        %702 = vmatprep.subr.bf16.mxu0 0
        %703 = vmatpush2.bf16.msra.mxu0 0
        %704 = vmatprep.subr.bf16.mxu0 0
        %705 = vmatpush2.bf16.msra.mxu0 0
        %706 = vmatprep.subr.bf16.mxu0 0
        %707 = vmatpush2.bf16.msra.mxu0 0
        %708 = vmatprep.subr.bf16.mxu0 0
        %709 = vmatpush2.bf16.msra.mxu0 0
        %710 = vmatprep.subr.bf16.mxu0 0
        %711 = vmatpush2.bf16.msra.mxu0 0
        %712 = vmatprep.subr.bf16.mxu0 0
        %713 = vmatpush2.bf16.msra.mxu0 0
        %714 = vmatprep.mubr.bf16.mxu0 0
        %715 = vmatmul.mubr.bf16.gmra.mxu0 %v680
        %v716 = vpop.f32.mrf.mxu0
        %v717 = vadd.f32 %v658, %v716
        %v718 = vpop.f32.mrf.mxu0
        %v719 = vpop.f32.mrf.mxu0
        %v720 = vadd.f32 %v658, %v719
        %v721 = vpop.f32.mrf.mxu0
        %722 = vdwg.mxu0
        %724 = vset.pattern.permute.xlu0 0
        %725 = vperm.xlu0 %724, %v559
        %v726 = vpop.permute.xlu0 %725
        %v729 = vlaneseq
        %v730 = vshrl.u32 %v729, 7
        %v731 = vsub.s32 0, %v730
        %v732 = vrot.slane %v560, %v731
        %v734 = vmul.f32 %v726, %v732
        %vm735 = vcmask 64512
        %v737 = vsel %vm735, %v641, 0
        %v740 = vsel %vm735, %v717, 0
        %v743 = vsel %vm735, %v720, 0
        %745 = vmatprep.subr.mxu0 0.0
        %746 = vmatpush1.xpose.msra.mxu0 0.0
        %747 = vmatprep.subr.mxu0 0.0
        %748 = vmatpush1.xpose.msra.mxu0 0.0
        %749 = vmatprep.subr.mxu0 0.0
        %750 = vmatpush1.xpose.msra.mxu0 0.0
        %751 = vmatprep.subr.mxu0 0.0
        %752 = vmatpush1.xpose.msra.mxu0 0.0
        %753 = vmatprep.subr.mxu0 0.0
        %754 = vmatpush1.xpose.msra.mxu0 0.0
        %755 = vmatprep.subr.mxu0 0.0
        %756 = vmatpush1.xpose.msra.mxu0 0.0
        %757 = vmatprep.subr.mxu0 0.0
        %758 = vmatpush1.xpose.msra.mxu0 0.0
        %759 = vmatprep.subr.mxu0 0.0
        %760 = vmatpush1.xpose.msra.mxu0 0.0
        %761 = vmatprep.subr.mxu0 0.0
        %762 = vmatpush1.xpose.msra.mxu0 0.0
        %763 = vmatprep.subr.mxu0 0.0
        %764 = vmatpush1.xpose.msra.mxu0 0.0
        %765 = vmatprep.subr.mxu0 0.0
        %766 = vmatpush1.xpose.msra.mxu0 0.0
        %767 = vmatprep.subr.mxu0 0.0
        %768 = vmatpush1.xpose.msra.mxu0 0.0
        %769 = vmatprep.subr.mxu0 0.0
        %770 = vmatpush1.xpose.msra.mxu0 0.0
        %771 = vmatprep.subr.mxu0 0.0
        %772 = vmatpush1.xpose.msra.mxu0 0.0
        %773 = vmatprep.subr.mxu0 0.0
        %774 = vmatpush1.xpose.msra.mxu0 %v743
        %775 = vmatprep.subr.mxu0 0.0
        %776 = vmatpush1.xpose.msra.mxu0 %v740
        %777 = vmatprep.subr.mxu0 0.0
        %778 = vmatpush2.xpose.msra.mxu0 0.0
        %779 = vmatprep.subr.mxu0 0.0
        %780 = vmatpush2.xpose.msra.mxu0 0.0
        %781 = vmatprep.subr.mxu0 0.0
        %782 = vmatpush2.xpose.msra.mxu0 0.0
        %783 = vmatprep.subr.mxu0 0.0
        %784 = vmatpush2.xpose.msra.mxu0 0.0
        %785 = vmatprep.subr.mxu0 0.0
        %786 = vmatpush2.xpose.msra.mxu0 0.0
        %787 = vmatprep.subr.mxu0 0.0
        %788 = vmatpush2.xpose.msra.mxu0 0.0
        %789 = vmatprep.subr.mxu0 0.0
        %790 = vmatpush2.xpose.msra.mxu0 0.0
        %791 = vmatprep.subr.mxu0 0.0
        %792 = vmatpush2.xpose.msra.mxu0 0.0
        %793 = vmatprep.subr.mxu0 0.0
        %794 = vmatpush2.xpose.msra.mxu0 0.0
        %795 = vmatprep.subr.mxu0 0.0
        %796 = vmatpush2.xpose.msra.mxu0 0.0
        %797 = vmatprep.subr.mxu0 0.0
        %798 = vmatpush2.xpose.msra.mxu0 0.0
        %799 = vmatprep.subr.mxu0 0.0
        %800 = vmatpush2.xpose.msra.mxu0 0.0
        %801 = vmatprep.subr.mxu0 0.0
        %802 = vmatpush2.xpose.msra.mxu0 0.0
        %803 = vmatprep.subr.mxu0 0.0
        %804 = vmatpush2.xpose.msra.mxu0 0.0
        %805 = vmatprep.subr.mxu0 0.0
        %806 = vmatpush2.xpose.msra.mxu0 0.0
        %807 = vmatprep.subr.mxu0 0.0
        %808 = vmatpush2.xpose.msra.mxu0 0.0
        %809 = vmatprep.mubr.f32.mxu0 0.0
        %810 = vmatmul.mubr.f32.gmra.mxu0 %v737
        %v811 = vpop.f32.mrf.mxu0
        %v812 = vadd.f32 0.0, %v811
        %v813 = vpop.f32.mrf.mxu0
        %814 = vdwg.mxu0
        %vm815 = vcmp.eq.f32.partialorder %v734, 1.0
        %v816 = vsel %vm815, %v812, -3.4028235e+38
        %vm817 = vcmask 130048
        %v818 = vsel %vm817, %v816, -inf
        %819 = vmax.xlane.f32.xlu0 %v818
        %v820 = vpop.xlane.xlu0 %819
        %v821 = vsub.f32 %v816, %v820
        %v822 = vmul.f32 %v821, 1.442695
        %v823 = vpow.pop %v822
        %v824 = vsel %vm817, %v823, 0.0
        %825 = vadd.xlane.f32.xlu0 %v824
        %v826 = vpop.xlane.xlu0 %825
        %v827 = vrcp.pop %v826
        %v828 = vmul.f32 %v823, %v827
        %829 = vrot.lane.b32.xlu0 %v717, 96
        %v830 = vpop.permute.xlu0 %829
        %831 = vrot.lane.b32.xlu0 %v720, 96
        %v832 = vpop.permute.xlu0 %831
        %v836 = vsel %vm817, %v828, 0
        %838 = vmatprep.subr.mxu0 0.0
        %839 = vmatpush1.msra.mxu0 0.0
        %840 = vmatprep.subr.mxu0 0.0
        %841 = vmatpush1.msra.mxu0 0.0
        %842 = vmatprep.subr.mxu0 0.0
        %843 = vmatpush1.msra.mxu0 0.0
        %844 = vmatprep.subr.mxu0 0.0
        %845 = vmatpush1.msra.mxu0 0.0
        %846 = vmatprep.subr.mxu0 0.0
        %847 = vmatpush1.msra.mxu0 0.0
        %848 = vmatprep.subr.mxu0 0.0
        %849 = vmatpush1.msra.mxu0 0.0
        %850 = vmatprep.subr.mxu0 0.0
        %851 = vmatpush1.msra.mxu0 0.0
        %852 = vmatprep.subr.mxu0 0.0
        %853 = vmatpush1.msra.mxu0 0.0
        %854 = vmatprep.subr.mxu0 0.0
        %855 = vmatpush1.msra.mxu0 0.0
        %856 = vmatprep.subr.mxu0 0.0
        %857 = vmatpush1.msra.mxu0 0.0
        %858 = vmatprep.subr.mxu0 0.0
        %859 = vmatpush1.msra.mxu0 0.0
        %860 = vmatprep.subr.mxu0 0.0
        %861 = vmatpush1.msra.mxu0 0.0
        %862 = vmatprep.subr.mxu0 0.0
        %863 = vmatpush1.msra.mxu0 0.0
        %864 = vmatprep.subr.mxu0 0.0
        %865 = vmatpush1.msra.mxu0 0.0
        %866 = vmatprep.subr.mxu0 0.0
        %867 = vmatpush1.msra.mxu0 %v832
        %868 = vmatprep.subr.mxu0 0.0
        %869 = vmatpush1.msra.mxu0 %v830
        %870 = vmatprep.subr.mxu0 0.0
        %871 = vmatpush2.msra.mxu0 0.0
        %872 = vmatprep.subr.mxu0 0.0
        %873 = vmatpush2.msra.mxu0 0.0
        %874 = vmatprep.subr.mxu0 0.0
        %875 = vmatpush2.msra.mxu0 0.0
        %876 = vmatprep.subr.mxu0 0.0
        %877 = vmatpush2.msra.mxu0 0.0
        %878 = vmatprep.subr.mxu0 0.0
        %879 = vmatpush2.msra.mxu0 0.0
        %880 = vmatprep.subr.mxu0 0.0
        %881 = vmatpush2.msra.mxu0 0.0
        %882 = vmatprep.subr.mxu0 0.0
        %883 = vmatpush2.msra.mxu0 0.0
        %884 = vmatprep.subr.mxu0 0.0
        %885 = vmatpush2.msra.mxu0 0.0
        %886 = vmatprep.subr.mxu0 0.0
        %887 = vmatpush2.msra.mxu0 0.0
        %888 = vmatprep.subr.mxu0 0.0
        %889 = vmatpush2.msra.mxu0 0.0
        %890 = vmatprep.subr.mxu0 0.0
        %891 = vmatpush2.msra.mxu0 0.0
        %892 = vmatprep.subr.mxu0 0.0
        %893 = vmatpush2.msra.mxu0 0.0
        %894 = vmatprep.subr.mxu0 0.0
        %895 = vmatpush2.msra.mxu0 0.0
        %896 = vmatprep.subr.mxu0 0.0
        %897 = vmatpush2.msra.mxu0 0.0
        %898 = vmatprep.subr.mxu0 0.0
        %899 = vmatpush2.msra.mxu0 0.0
        %900 = vmatprep.subr.mxu0 0.0
        %901 = vmatpush2.msra.mxu0 0.0
        %902 = vmatprep.mubr.f32.mxu0 0.0
        %903 = vmatmul.mubr.f32.gmra.mxu0 %v836
        %v904 = vpop.f32.mrf.mxu0
        %v905 = vadd.f32 0.0, %v904
        %v906 = vpop.f32.mrf.mxu0
        %907 = vdwg.mxu0
        %908 = vst.msk [vmem:[#allocation2] sm:$0xff] %vm735, %v905
        %909 = vrot.lane.b32.xlu0 %v641, 120
        %v910 = vpop.permute.xlu0 %909
        %911 = vrot.lane.b32.xlu0 %v717, 120
        %v912 = vpop.permute.xlu0 %911
        %913 = vrot.lane.b32.xlu0 %v720, 120
        %v914 = vpop.permute.xlu0 %913
        %v915 = vsel %vm735, %v910, 0
        %v917 = vsel %vm735, %v912, 0
        %v919 = vsel %vm735, %v914, 0
        %921 = vmatprep.subr.mxu0 0.0
        %922 = vmatpush1.xpose.msra.mxu0 0.0
        %923 = vmatprep.subr.mxu0 0.0
        %924 = vmatpush1.xpose.msra.mxu0 0.0
        %925 = vmatprep.subr.mxu0 0.0
        %926 = vmatpush1.xpose.msra.mxu0 0.0
        %927 = vmatprep.subr.mxu0 0.0
        %928 = vmatpush1.xpose.msra.mxu0 0.0
        %929 = vmatprep.subr.mxu0 0.0
        %930 = vmatpush1.xpose.msra.mxu0 0.0
        %931 = vmatprep.subr.mxu0 0.0
        %932 = vmatpush1.xpose.msra.mxu0 0.0
        %933 = vmatprep.subr.mxu0 0.0
        %934 = vmatpush1.xpose.msra.mxu0 0.0
        %935 = vmatprep.subr.mxu0 0.0
        %936 = vmatpush1.xpose.msra.mxu0 0.0
        %937 = vmatprep.subr.mxu0 0.0
        %938 = vmatpush1.xpose.msra.mxu0 0.0
        %939 = vmatprep.subr.mxu0 0.0
        %940 = vmatpush1.xpose.msra.mxu0 0.0
        %941 = vmatprep.subr.mxu0 0.0
        %942 = vmatpush1.xpose.msra.mxu0 0.0
        %943 = vmatprep.subr.mxu0 0.0
        %944 = vmatpush1.xpose.msra.mxu0 0.0
        %945 = vmatprep.subr.mxu0 0.0
        %946 = vmatpush1.xpose.msra.mxu0 0.0
        %947 = vmatprep.subr.mxu0 0.0
        %948 = vmatpush1.xpose.msra.mxu0 0.0
        %949 = vmatprep.subr.mxu0 0.0
        %950 = vmatpush1.xpose.msra.mxu0 %v919
        %951 = vmatprep.subr.mxu0 0.0
        %952 = vmatpush1.xpose.msra.mxu0 %v917
        %953 = vmatprep.subr.mxu0 0.0
        %954 = vmatpush2.xpose.msra.mxu0 0.0
        %955 = vmatprep.subr.mxu0 0.0
        %956 = vmatpush2.xpose.msra.mxu0 0.0
        %957 = vmatprep.subr.mxu0 0.0
        %958 = vmatpush2.xpose.msra.mxu0 0.0
        %959 = vmatprep.subr.mxu0 0.0
        %960 = vmatpush2.xpose.msra.mxu0 0.0
        %961 = vmatprep.subr.mxu0 0.0
        %962 = vmatpush2.xpose.msra.mxu0 0.0
        %963 = vmatprep.subr.mxu0 0.0
        %964 = vmatpush2.xpose.msra.mxu0 0.0
        %965 = vmatprep.subr.mxu0 0.0
        %966 = vmatpush2.xpose.msra.mxu0 0.0
        %967 = vmatprep.subr.mxu0 0.0
        %968 = vmatpush2.xpose.msra.mxu0 0.0
        %969 = vmatprep.subr.mxu0 0.0
        %970 = vmatpush2.xpose.msra.mxu0 0.0
        %971 = vmatprep.subr.mxu0 0.0
        %972 = vmatpush2.xpose.msra.mxu0 0.0
        %973 = vmatprep.subr.mxu0 0.0
        %974 = vmatpush2.xpose.msra.mxu0 0.0
        %975 = vmatprep.subr.mxu0 0.0
        %976 = vmatpush2.xpose.msra.mxu0 0.0
        %977 = vmatprep.subr.mxu0 0.0
        %978 = vmatpush2.xpose.msra.mxu0 0.0
        %979 = vmatprep.subr.mxu0 0.0
        %980 = vmatpush2.xpose.msra.mxu0 0.0
        %981 = vmatprep.subr.mxu0 0.0
        %982 = vmatpush2.xpose.msra.mxu0 0.0
        %983 = vmatprep.subr.mxu0 0.0
        %984 = vmatpush2.xpose.msra.mxu0 0.0
        %985 = vmatprep.mubr.f32.mxu0 0.0
        %986 = vmatmul.mubr.f32.gmra.mxu0 %v915
        %v987 = vpop.f32.mrf.mxu0
        %v988 = vadd.f32 0.0, %v987
        %v989 = vpop.f32.mrf.mxu0
        %990 = vdwg.mxu0
        %v991 = vsel %vm815, %v988, -3.4028235e+38
        %v992 = vsel %vm817, %v991, -inf
        %993 = vmax.xlane.f32.xlu0 %v992
        %v994 = vpop.xlane.xlu0 %993
        %v995 = vsub.f32 %v991, %v994
        %v996 = vmul.f32 %v995, 1.442695
        %v997 = vpow.pop %v996
        %v998 = vsel %vm817, %v997, 0.0
        %999 = vadd.xlane.f32.xlu0 %v998
        %v1000 = vpop.xlane.xlu0 %999
        %v1001 = vrcp.pop %v1000
        %v1002 = vmul.f32 %v997, %v1001
        %1003 = vrot.lane.b32.xlu0 %v717, 88
        %v1004 = vpop.permute.xlu0 %1003
        %1005 = vrot.lane.b32.xlu0 %v720, 88
        %v1006 = vpop.permute.xlu0 %1005
        %v1010 = vsel %vm817, %v1002, 0
        %1012 = vmatprep.subr.mxu0 0.0
        %1013 = vmatpush1.msra.mxu0 0.0
        %1014 = vmatprep.subr.mxu0 0.0
        %1015 = vmatpush1.msra.mxu0 0.0
        %1016 = vmatprep.subr.mxu0 0.0
        %1017 = vmatpush1.msra.mxu0 0.0
        %1018 = vmatprep.subr.mxu0 0.0
        %1019 = vmatpush1.msra.mxu0 0.0
        %1020 = vmatprep.subr.mxu0 0.0
        %1021 = vmatpush1.msra.mxu0 0.0
        %1022 = vmatprep.subr.mxu0 0.0
        %1023 = vmatpush1.msra.mxu0 0.0
        %1024 = vmatprep.subr.mxu0 0.0
        %1025 = vmatpush1.msra.mxu0 0.0
        %1026 = vmatprep.subr.mxu0 0.0
        %1027 = vmatpush1.msra.mxu0 0.0
        %1028 = vmatprep.subr.mxu0 0.0
        %1029 = vmatpush1.msra.mxu0 0.0
        %1030 = vmatprep.subr.mxu0 0.0
        %1031 = vmatpush1.msra.mxu0 0.0
        %1032 = vmatprep.subr.mxu0 0.0
        %1033 = vmatpush1.msra.mxu0 0.0
        %1034 = vmatprep.subr.mxu0 0.0
        %1035 = vmatpush1.msra.mxu0 0.0
        %1036 = vmatprep.subr.mxu0 0.0
        %1037 = vmatpush1.msra.mxu0 0.0
        %1038 = vmatprep.subr.mxu0 0.0
        %1039 = vmatpush1.msra.mxu0 0.0
        %1040 = vmatprep.subr.mxu0 0.0
        %1041 = vmatpush1.msra.mxu0 %v1006
        %1042 = vmatprep.subr.mxu0 0.0
        %1043 = vmatpush1.msra.mxu0 %v1004
        %1044 = vmatprep.subr.mxu0 0.0
        %1045 = vmatpush2.msra.mxu0 0.0
        %1046 = vmatprep.subr.mxu0 0.0
        %1047 = vmatpush2.msra.mxu0 0.0
        %1048 = vmatprep.subr.mxu0 0.0
        %1049 = vmatpush2.msra.mxu0 0.0
        %1050 = vmatprep.subr.mxu0 0.0
        %1051 = vmatpush2.msra.mxu0 0.0
        %1052 = vmatprep.subr.mxu0 0.0
        %1053 = vmatpush2.msra.mxu0 0.0
        %1054 = vmatprep.subr.mxu0 0.0
        %1055 = vmatpush2.msra.mxu0 0.0
        %1056 = vmatprep.subr.mxu0 0.0
        %1057 = vmatpush2.msra.mxu0 0.0
        %1058 = vmatprep.subr.mxu0 0.0
        %1059 = vmatpush2.msra.mxu0 0.0
        %1060 = vmatprep.subr.mxu0 0.0
        %1061 = vmatpush2.msra.mxu0 0.0
        %1062 = vmatprep.subr.mxu0 0.0
        %1063 = vmatpush2.msra.mxu0 0.0
        %1064 = vmatprep.subr.mxu0 0.0
        %1065 = vmatpush2.msra.mxu0 0.0
        %1066 = vmatprep.subr.mxu0 0.0
        %1067 = vmatpush2.msra.mxu0 0.0
        %1068 = vmatprep.subr.mxu0 0.0
        %1069 = vmatpush2.msra.mxu0 0.0
        %1070 = vmatprep.subr.mxu0 0.0
        %1071 = vmatpush2.msra.mxu0 0.0
        %1072 = vmatprep.subr.mxu0 0.0
        %1073 = vmatpush2.msra.mxu0 0.0
        %1074 = vmatprep.subr.mxu0 0.0
        %1075 = vmatpush2.msra.mxu0 0.0
        %1076 = vmatprep.mubr.f32.mxu0 0.0
        %1077 = vmatmul.mubr.f32.gmra.mxu0 %v1010
        %v1078 = vpop.f32.mrf.mxu0
        %v1079 = vadd.f32 0.0, %v1078
        %v1080 = vpop.f32.mrf.mxu0
        %1081 = vdwg.mxu0
        %1083 = vrot.lane.b32.xlu0 %v1079, 8
        %v1084 = vpop.permute.xlu0 %1083
        %vm1086 = vcmask 130112
        %1087 = vst.msk [vmem:[#allocation2] sm:$0xff] %vm1086, %v1084
        %1088 = vrot.lane.b32.xlu0 %v641, 112
        %v1089 = vpop.permute.xlu0 %1088
        %1090 = vrot.lane.b32.xlu0 %v717, 112
        %v1091 = vpop.permute.xlu0 %1090
        %1092 = vrot.lane.b32.xlu0 %v720, 112
        %v1093 = vpop.permute.xlu0 %1092
        %v1094 = vsel %vm735, %v1089, 0
        %v1096 = vsel %vm735, %v1091, 0
        %v1098 = vsel %vm735, %v1093, 0
        %1100 = vmatprep.subr.mxu0 0.0
        %1101 = vmatpush1.xpose.msra.mxu0 0.0
        %1102 = vmatprep.subr.mxu0 0.0
        %1103 = vmatpush1.xpose.msra.mxu0 0.0
        %1104 = vmatprep.subr.mxu0 0.0
        %1105 = vmatpush1.xpose.msra.mxu0 0.0
        %1106 = vmatprep.subr.mxu0 0.0
        %1107 = vmatpush1.xpose.msra.mxu0 0.0
        %1108 = vmatprep.subr.mxu0 0.0
        %1109 = vmatpush1.xpose.msra.mxu0 0.0
        %1110 = vmatprep.subr.mxu0 0.0
        %1111 = vmatpush1.xpose.msra.mxu0 0.0
        %1112 = vmatprep.subr.mxu0 0.0
        %1113 = vmatpush1.xpose.msra.mxu0 0.0
        %1114 = vmatprep.subr.mxu0 0.0
        %1115 = vmatpush1.xpose.msra.mxu0 0.0
        %1116 = vmatprep.subr.mxu0 0.0
        %1117 = vmatpush1.xpose.msra.mxu0 0.0
        %1118 = vmatprep.subr.mxu0 0.0
        %1119 = vmatpush1.xpose.msra.mxu0 0.0
        %1120 = vmatprep.subr.mxu0 0.0
        %1121 = vmatpush1.xpose.msra.mxu0 0.0
        %1122 = vmatprep.subr.mxu0 0.0
        %1123 = vmatpush1.xpose.msra.mxu0 0.0
        %1124 = vmatprep.subr.mxu0 0.0
        %1125 = vmatpush1.xpose.msra.mxu0 0.0
        %1126 = vmatprep.subr.mxu0 0.0
        %1127 = vmatpush1.xpose.msra.mxu0 0.0
        %1128 = vmatprep.subr.mxu0 0.0
        %1129 = vmatpush1.xpose.msra.mxu0 %v1098
        %1130 = vmatprep.subr.mxu0 0.0
        %1131 = vmatpush1.xpose.msra.mxu0 %v1096
        %1132 = vmatprep.subr.mxu0 0.0
        %1133 = vmatpush2.xpose.msra.mxu0 0.0
        %1134 = vmatprep.subr.mxu0 0.0
        %1135 = vmatpush2.xpose.msra.mxu0 0.0
        %1136 = vmatprep.subr.mxu0 0.0
        %1137 = vmatpush2.xpose.msra.mxu0 0.0
        %1138 = vmatprep.subr.mxu0 0.0
        %1139 = vmatpush2.xpose.msra.mxu0 0.0
        %1140 = vmatprep.subr.mxu0 0.0
        %1141 = vmatpush2.xpose.msra.mxu0 0.0
        %1142 = vmatprep.subr.mxu0 0.0
        %1143 = vmatpush2.xpose.msra.mxu0 0.0
        %1144 = vmatprep.subr.mxu0 0.0
        %1145 = vmatpush2.xpose.msra.mxu0 0.0
        %1146 = vmatprep.subr.mxu0 0.0
        %1147 = vmatpush2.xpose.msra.mxu0 0.0
        %1148 = vmatprep.subr.mxu0 0.0
        %1149 = vmatpush2.xpose.msra.mxu0 0.0
        %1150 = vmatprep.subr.mxu0 0.0
        %1151 = vmatpush2.xpose.msra.mxu0 0.0
        %1152 = vmatprep.subr.mxu0 0.0
        %1153 = vmatpush2.xpose.msra.mxu0 0.0
        %1154 = vmatprep.subr.mxu0 0.0
        %1155 = vmatpush2.xpose.msra.mxu0 0.0
        %1156 = vmatprep.subr.mxu0 0.0
        %1157 = vmatpush2.xpose.msra.mxu0 0.0
        %1158 = vmatprep.subr.mxu0 0.0
        %1159 = vmatpush2.xpose.msra.mxu0 0.0
        %1160 = vmatprep.subr.mxu0 0.0
        %1161 = vmatpush2.xpose.msra.mxu0 0.0
        %1162 = vmatprep.subr.mxu0 0.0
        %1163 = vmatpush2.xpose.msra.mxu0 0.0
        %1164 = vmatprep.mubr.f32.mxu0 0.0
        %1165 = vmatmul.mubr.f32.gmra.mxu0 %v1094
        %v1166 = vpop.f32.mrf.mxu0
        %v1167 = vadd.f32 0.0, %v1166
        %v1168 = vpop.f32.mrf.mxu0
        %1169 = vdwg.mxu0
        %v1170 = vsel %vm815, %v1167, -3.4028235e+38
        %v1171 = vsel %vm817, %v1170, -inf
        %1172 = vmax.xlane.f32.xlu0 %v1171
        %v1173 = vpop.xlane.xlu0 %1172
        %v1174 = vsub.f32 %v1170, %v1173
        %v1175 = vmul.f32 %v1174, 1.442695
        %v1176 = vpow.pop %v1175
        %v1177 = vsel %vm817, %v1176, 0.0
        %1178 = vadd.xlane.f32.xlu0 %v1177
        %v1179 = vpop.xlane.xlu0 %1178
        %v1180 = vrcp.pop %v1179
        %v1181 = vmul.f32 %v1176, %v1180
        %1182 = vrot.lane.b32.xlu0 %v717, 80
        %v1183 = vpop.permute.xlu0 %1182
        %1184 = vrot.lane.b32.xlu0 %v720, 80
        %v1185 = vpop.permute.xlu0 %1184
        %v1189 = vsel %vm817, %v1181, 0
        %1191 = vmatprep.subr.mxu0 0.0
        %1192 = vmatpush1.msra.mxu0 0.0
        %1193 = vmatprep.subr.mxu0 0.0
        %1194 = vmatpush1.msra.mxu0 0.0
        %1195 = vmatprep.subr.mxu0 0.0
        %1196 = vmatpush1.msra.mxu0 0.0
        %1197 = vmatprep.subr.mxu0 0.0
        %1198 = vmatpush1.msra.mxu0 0.0
        %1199 = vmatprep.subr.mxu0 0.0
        %1200 = vmatpush1.msra.mxu0 0.0
        %1201 = vmatprep.subr.mxu0 0.0
        %1202 = vmatpush1.msra.mxu0 0.0
        %1203 = vmatprep.subr.mxu0 0.0
        %1204 = vmatpush1.msra.mxu0 0.0
        %1205 = vmatprep.subr.mxu0 0.0
        %1206 = vmatpush1.msra.mxu0 0.0
        %1207 = vmatprep.subr.mxu0 0.0
        %1208 = vmatpush1.msra.mxu0 0.0
        %1209 = vmatprep.subr.mxu0 0.0
        %1210 = vmatpush1.msra.mxu0 0.0
        %1211 = vmatprep.subr.mxu0 0.0
        %1212 = vmatpush1.msra.mxu0 0.0
        %1213 = vmatprep.subr.mxu0 0.0
        %1214 = vmatpush1.msra.mxu0 0.0
        %1215 = vmatprep.subr.mxu0 0.0
        %1216 = vmatpush1.msra.mxu0 0.0
        %1217 = vmatprep.subr.mxu0 0.0
        %1218 = vmatpush1.msra.mxu0 0.0
        %1219 = vmatprep.subr.mxu0 0.0
        %1220 = vmatpush1.msra.mxu0 %v1185
        %1221 = vmatprep.subr.mxu0 0.0
        %1222 = vmatpush1.msra.mxu0 %v1183
        %1223 = vmatprep.subr.mxu0 0.0
        %1224 = vmatpush2.msra.mxu0 0.0
        %1225 = vmatprep.subr.mxu0 0.0
        %1226 = vmatpush2.msra.mxu0 0.0
        %1227 = vmatprep.subr.mxu0 0.0
        %1228 = vmatpush2.msra.mxu0 0.0
        %1229 = vmatprep.subr.mxu0 0.0
        %1230 = vmatpush2.msra.mxu0 0.0
        %1231 = vmatprep.subr.mxu0 0.0
        %1232 = vmatpush2.msra.mxu0 0.0
        %1233 = vmatprep.subr.mxu0 0.0
        %1234 = vmatpush2.msra.mxu0 0.0
        %1235 = vmatprep.subr.mxu0 0.0
        %1236 = vmatpush2.msra.mxu0 0.0
        %1237 = vmatprep.subr.mxu0 0.0
        %1238 = vmatpush2.msra.mxu0 0.0
        %1239 = vmatprep.subr.mxu0 0.0
        %1240 = vmatpush2.msra.mxu0 0.0
        %1241 = vmatprep.subr.mxu0 0.0
        %1242 = vmatpush2.msra.mxu0 0.0
        %1243 = vmatprep.subr.mxu0 0.0
        %1244 = vmatpush2.msra.mxu0 0.0
        %1245 = vmatprep.subr.mxu0 0.0
        %1246 = vmatpush2.msra.mxu0 0.0
        %1247 = vmatprep.subr.mxu0 0.0
        %1248 = vmatpush2.msra.mxu0 0.0
        %1249 = vmatprep.subr.mxu0 0.0
        %1250 = vmatpush2.msra.mxu0 0.0
        %1251 = vmatprep.subr.mxu0 0.0
        %1252 = vmatpush2.msra.mxu0 0.0
        %1253 = vmatprep.subr.mxu0 0.0
        %1254 = vmatpush2.msra.mxu0 0.0
        %1255 = vmatprep.mubr.f32.mxu0 0.0
        %1256 = vmatmul.mubr.f32.gmra.mxu0 %v1189
        %v1257 = vpop.f32.mrf.mxu0
        %v1258 = vadd.f32 0.0, %v1257
        %v1259 = vpop.f32.mrf.mxu0
        %1260 = vdwg.mxu0
        %1262 = vrot.lane.b32.xlu0 %v1258, 16
        %v1263 = vpop.permute.xlu0 %1262
        %vm1265 = vcmask 195712
        %1266 = vst.msk [vmem:[#allocation2] sm:$0xff] %vm1265, %v1263
        %1267 = vrot.lane.b32.xlu0 %v641, 104
        %v1268 = vpop.permute.xlu0 %1267
        %1269 = vrot.lane.b32.xlu0 %v717, 104
        %v1270 = vpop.permute.xlu0 %1269
        %1271 = vrot.lane.b32.xlu0 %v720, 104
        %v1272 = vpop.permute.xlu0 %1271
        %v1273 = vsel %vm735, %v1268, 0
        %v1275 = vsel %vm735, %v1270, 0
        %v1277 = vsel %vm735, %v1272, 0
        %1279 = vmatprep.subr.mxu0 0.0
        %1280 = vmatpush1.xpose.msra.mxu0 0.0
        %1281 = vmatprep.subr.mxu0 0.0
        %1282 = vmatpush1.xpose.msra.mxu0 0.0
        %1283 = vmatprep.subr.mxu0 0.0
        %1284 = vmatpush1.xpose.msra.mxu0 0.0
        %1285 = vmatprep.subr.mxu0 0.0
        %1286 = vmatpush1.xpose.msra.mxu0 0.0
        %1287 = vmatprep.subr.mxu0 0.0
        %1288 = vmatpush1.xpose.msra.mxu0 0.0
        %1289 = vmatprep.subr.mxu0 0.0
        %1290 = vmatpush1.xpose.msra.mxu0 0.0
        %1291 = vmatprep.subr.mxu0 0.0
        %1292 = vmatpush1.xpose.msra.mxu0 0.0
        %1293 = vmatprep.subr.mxu0 0.0
        %1294 = vmatpush1.xpose.msra.mxu0 0.0
        %1295 = vmatprep.subr.mxu0 0.0
        %1296 = vmatpush1.xpose.msra.mxu0 0.0
        %1297 = vmatprep.subr.mxu0 0.0
        %1298 = vmatpush1.xpose.msra.mxu0 0.0
        %1299 = vmatprep.subr.mxu0 0.0
        %1300 = vmatpush1.xpose.msra.mxu0 0.0
        %1301 = vmatprep.subr.mxu0 0.0
        %1302 = vmatpush1.xpose.msra.mxu0 0.0
        %1303 = vmatprep.subr.mxu0 0.0
        %1304 = vmatpush1.xpose.msra.mxu0 0.0
        %1305 = vmatprep.subr.mxu0 0.0
        %1306 = vmatpush1.xpose.msra.mxu0 0.0
        %1307 = vmatprep.subr.mxu0 0.0
        %1308 = vmatpush1.xpose.msra.mxu0 %v1277
        %1309 = vmatprep.subr.mxu0 0.0
        %1310 = vmatpush1.xpose.msra.mxu0 %v1275
        %1311 = vmatprep.subr.mxu0 0.0
        %1312 = vmatpush2.xpose.msra.mxu0 0.0
        %1313 = vmatprep.subr.mxu0 0.0
        %1314 = vmatpush2.xpose.msra.mxu0 0.0
        %1315 = vmatprep.subr.mxu0 0.0
        %1316 = vmatpush2.xpose.msra.mxu0 0.0
        %1317 = vmatprep.subr.mxu0 0.0
        %1318 = vmatpush2.xpose.msra.mxu0 0.0
        %1319 = vmatprep.subr.mxu0 0.0
        %1320 = vmatpush2.xpose.msra.mxu0 0.0
        %1321 = vmatprep.subr.mxu0 0.0
        %1322 = vmatpush2.xpose.msra.mxu0 0.0
        %1323 = vmatprep.subr.mxu0 0.0
        %1324 = vmatpush2.xpose.msra.mxu0 0.0
        %1325 = vmatprep.subr.mxu0 0.0
        %1326 = vmatpush2.xpose.msra.mxu0 0.0
        %1327 = vmatprep.subr.mxu0 0.0
        %1328 = vmatpush2.xpose.msra.mxu0 0.0
        %1329 = vmatprep.subr.mxu0 0.0
        %1330 = vmatpush2.xpose.msra.mxu0 0.0
        %1331 = vmatprep.subr.mxu0 0.0
        %1332 = vmatpush2.xpose.msra.mxu0 0.0
        %1333 = vmatprep.subr.mxu0 0.0
        %1334 = vmatpush2.xpose.msra.mxu0 0.0
        %1335 = vmatprep.subr.mxu0 0.0
        %1336 = vmatpush2.xpose.msra.mxu0 0.0
        %1337 = vmatprep.subr.mxu0 0.0
        %1338 = vmatpush2.xpose.msra.mxu0 0.0
        %1339 = vmatprep.subr.mxu0 0.0
        %1340 = vmatpush2.xpose.msra.mxu0 0.0
        %1341 = vmatprep.subr.mxu0 0.0
        %1342 = vmatpush2.xpose.msra.mxu0 0.0
        %1343 = vmatprep.mubr.f32.mxu0 0.0
        %1344 = vmatmul.mubr.f32.gmra.mxu0 %v1273
        %v1345 = vpop.f32.mrf.mxu0
        %v1346 = vadd.f32 0.0, %v1345
        %v1347 = vpop.f32.mrf.mxu0
        %1348 = vdwg.mxu0
        %v1349 = vsel %vm815, %v1346, -3.4028235e+38
        %v1350 = vsel %vm817, %v1349, -inf
        %1351 = vmax.xlane.f32.xlu0 %v1350
        %v1352 = vpop.xlane.xlu0 %1351
        %v1353 = vsub.f32 %v1349, %v1352
        %v1354 = vmul.f32 %v1353, 1.442695
        %v1355 = vpow.pop %v1354
        %v1356 = vsel %vm817, %v1355, 0.0
        %1357 = vadd.xlane.f32.xlu0 %v1356
        %v1358 = vpop.xlane.xlu0 %1357
        %v1359 = vrcp.pop %v1358
        %v1360 = vmul.f32 %v1355, %v1359
        %1361 = vrot.lane.b32.xlu0 %v717, 72
        %v1362 = vpop.permute.xlu0 %1361
        %1363 = vrot.lane.b32.xlu0 %v720, 72
        %v1364 = vpop.permute.xlu0 %1363
        %v1368 = vsel %vm817, %v1360, 0
        %1370 = vmatprep.subr.mxu0 0.0
        %1371 = vmatpush1.msra.mxu0 0.0
        %1372 = vmatprep.subr.mxu0 0.0
        %1373 = vmatpush1.msra.mxu0 0.0
        %1374 = vmatprep.subr.mxu0 0.0
        %1375 = vmatpush1.msra.mxu0 0.0
        %1376 = vmatprep.subr.mxu0 0.0
        %1377 = vmatpush1.msra.mxu0 0.0
        %1378 = vmatprep.subr.mxu0 0.0
        %1379 = vmatpush1.msra.mxu0 0.0
        %1380 = vmatprep.subr.mxu0 0.0
        %1381 = vmatpush1.msra.mxu0 0.0
        %1382 = vmatprep.subr.mxu0 0.0
        %1383 = vmatpush1.msra.mxu0 0.0
        %1384 = vmatprep.subr.mxu0 0.0
        %1385 = vmatpush1.msra.mxu0 0.0
        %1386 = vmatprep.subr.mxu0 0.0
        %1387 = vmatpush1.msra.mxu0 0.0
        %1388 = vmatprep.subr.mxu0 0.0
        %1389 = vmatpush1.msra.mxu0 0.0
        %1390 = vmatprep.subr.mxu0 0.0
        %1391 = vmatpush1.msra.mxu0 0.0
        %1392 = vmatprep.subr.mxu0 0.0
        %1393 = vmatpush1.msra.mxu0 0.0
        %1394 = vmatprep.subr.mxu0 0.0
        %1395 = vmatpush1.msra.mxu0 0.0
        %1396 = vmatprep.subr.mxu0 0.0
        %1397 = vmatpush1.msra.mxu0 0.0
        %1398 = vmatprep.subr.mxu0 0.0
        %1399 = vmatpush1.msra.mxu0 %v1364
        %1400 = vmatprep.subr.mxu0 0.0
        %1401 = vmatpush1.msra.mxu0 %v1362
        %1402 = vmatprep.subr.mxu0 0.0
        %1403 = vmatpush2.msra.mxu0 0.0
        %1404 = vmatprep.subr.mxu0 0.0
        %1405 = vmatpush2.msra.mxu0 0.0
        %1406 = vmatprep.subr.mxu0 0.0
        %1407 = vmatpush2.msra.mxu0 0.0
        %1408 = vmatprep.subr.mxu0 0.0
        %1409 = vmatpush2.msra.mxu0 0.0
        %1410 = vmatprep.subr.mxu0 0.0
        %1411 = vmatpush2.msra.mxu0 0.0
        %1412 = vmatprep.subr.mxu0 0.0
        %1413 = vmatpush2.msra.mxu0 0.0
        %1414 = vmatprep.subr.mxu0 0.0
        %1415 = vmatpush2.msra.mxu0 0.0
        %1416 = vmatprep.subr.mxu0 0.0
        %1417 = vmatpush2.msra.mxu0 0.0
        %1418 = vmatprep.subr.mxu0 0.0
        %1419 = vmatpush2.msra.mxu0 0.0
        %1420 = vmatprep.subr.mxu0 0.0
        %1421 = vmatpush2.msra.mxu0 0.0
        %1422 = vmatprep.subr.mxu0 0.0
        %1423 = vmatpush2.msra.mxu0 0.0
        %1424 = vmatprep.subr.mxu0 0.0
        %1425 = vmatpush2.msra.mxu0 0.0
        %1426 = vmatprep.subr.mxu0 0.0
        %1427 = vmatpush2.msra.mxu0 0.0
        %1428 = vmatprep.subr.mxu0 0.0
        %1429 = vmatpush2.msra.mxu0 0.0
        %1430 = vmatprep.subr.mxu0 0.0
        %1431 = vmatpush2.msra.mxu0 0.0
        %1432 = vmatprep.subr.mxu0 0.0
        %1433 = vmatpush2.msra.mxu0 0.0
        %1434 = vmatprep.mubr.f32.mxu0 0.0
        %1435 = vmatmul.mubr.f32.gmra.mxu0 %v1368
        %v1436 = vpop.f32.mrf.mxu0
        %v1437 = vadd.f32 0.0, %v1436
        %v1438 = vpop.f32.mrf.mxu0
        %1439 = vdwg.mxu0
        %1441 = vrot.lane.b32.xlu0 %v1437, 24
        %v1442 = vpop.permute.xlu0 %1441
        %vm1444 = vcmask 261312
        %1445 = vst.msk [vmem:[#allocation2] sm:$0xff] %vm1444, %v1442
        %v1446 = vld [vmem:[#allocation2] sm:$0xff]
        %v1447 = vpack.c.bf16 %v1446, %v1446
        %v1448 = vld [vmem:[%s9] sm:$0xf]
        %v1449 = vld [vmem:[%s9 + $0x4] sm:$0xf]
        %v1450 = vld [vmem:[%s9 + $0x8] sm:$0xf]
        %v1451 = vld [vmem:[%s9 + $0xc] sm:$0xf]
        %v1456 = vunpack.c.l.b16 %v1448
        %v1457 = vunpack.c.l.b16 %v1449
        %v1458 = vunpack.c.l.b16 %v1450
        %v1459 = vunpack.c.l.b16 %v1451
        %v1460 = vpack.c.b16 %v1457, %v1456
        %v1461 = vpack.c.b16 %v1459, %v1458
        %v1465 = vsel %vm562, %v1447, 0
        %1467 = vmatprep.subr.bf16.mxu0 0
        %1468 = vmatpush1.bf16.msra.mxu0 0
        %1469 = vmatprep.subr.bf16.mxu0 0
        %1470 = vmatpush1.bf16.msra.mxu0 0
        %1471 = vmatprep.subr.bf16.mxu0 0
        %1472 = vmatpush1.bf16.msra.mxu0 0
        %1473 = vmatprep.subr.bf16.mxu0 0
        %1474 = vmatpush1.bf16.msra.mxu0 0
        %1475 = vmatprep.subr.bf16.mxu0 0
        %1476 = vmatpush1.bf16.msra.mxu0 0
        %1477 = vmatprep.subr.bf16.mxu0 0
        %1478 = vmatpush1.bf16.msra.mxu0 0
        %1479 = vmatprep.subr.bf16.mxu0 0
        %1480 = vmatpush1.bf16.msra.mxu0 %v1461
        %1481 = vmatprep.subr.bf16.mxu0 0
        %1482 = vmatpush1.bf16.msra.mxu0 %v1460
        %1483 = vmatprep.subr.bf16.mxu0 0
        %1484 = vmatpush2.bf16.msra.mxu0 0
        %1485 = vmatprep.subr.bf16.mxu0 0
        %1486 = vmatpush2.bf16.msra.mxu0 0
        %1487 = vmatprep.subr.bf16.mxu0 0
        %1488 = vmatpush2.bf16.msra.mxu0 0
        %1489 = vmatprep.subr.bf16.mxu0 0
        %1490 = vmatpush2.bf16.msra.mxu0 0
        %1491 = vmatprep.subr.bf16.mxu0 0
        %1492 = vmatpush2.bf16.msra.mxu0 0
        %1493 = vmatprep.subr.bf16.mxu0 0
        %1494 = vmatpush2.bf16.msra.mxu0 0
        %1495 = vmatprep.subr.bf16.mxu0 0
        %1496 = vmatpush2.bf16.msra.mxu0 0
        %1497 = vmatprep.subr.bf16.mxu0 0
        %1498 = vmatpush2.bf16.msra.mxu0 0
        %1499 = vmatprep.mubr.bf16.mxu0 0
        %1500 = vmatmul.mubr.bf16.gmra.mxu0 %v1465
        %v1501 = vpop.f32.mrf.mxu0
        %v1502 = vadd.f32 0.0, %v1501
        %v1503 = vpop.f32.mrf.mxu0
        %v1504 = vpop.f32.mrf.mxu0
        %v1505 = vpop.f32.mrf.mxu0
        %1506 = vdwg.mxu0
        %s1507 = sld [smem:[#allocation3]]
        %s1508 = sld [smem:[#allocation3 + $0x1]]
        %v1509 = vstv %s1507
        %v1510 = vmul.f32 %v1509, %v1502
        %v1511 = vadd.f32 %v556, %v1510
        %v1512 = vsel %vm562, %v1511, 0.0
        %1513 = vadd.xlane.f32.xlu0 %v1512
        %v1514 = vpop.xlane.xlu0 %1513
        %v1515 = vmul.f32 %v1514, %v566
        %v1516 = vsub.f32 %v1511, %v1515
        %v1517 = vmul.f32 %v1516, %v1516
        %v1518 = vsel %vm562, %v1517, 0.0
        %1519 = vadd.xlane.f32.xlu0 %v1518
        %v1520 = vpop.xlane.xlu0 %1519
        %v1521 = vmul.f32 %v1520, %v566
        %v1522 = vadd.f32 %v1521, 1e-05
        %v1523 = vrsqrt.pop %v1522
        %v1524 = vmul.f32 %v1516, %v1523
        %v1525 = vld [vmem:[%s10] sm:$0x1]
        %v1527 = vlaneseq
        %v1528 = vshrl.u32 %v1527, 7
        %v1529 = vsub.s32 0, %v1528
        %v1530 = vrot.slane %v1525, %v1529
        %v1532 = vmul.f32 %v1524, %v1530
        %v1533 = vld [vmem:[%s11] sm:$0x1]
        %v1535 = vlaneseq
        %v1536 = vshrl.u32 %v1535, 7
        %v1537 = vsub.s32 0, %v1536
        %v1538 = vrot.slane %v1533, %v1537
        %v1540 = vadd.f32 %v1532, %v1538
        %v1541 = vpack.c.bf16 %v1540, %v1540
        %v1542 = vld [vmem:[%s12] sm:$0xf]
        %v1543 = vld [vmem:[%s12 + $0x4] sm:$0xf]
        %v1544 = vld [vmem:[%s12 + $0x8] sm:$0xf]
        %v1545 = vld [vmem:[%s12 + $0xc] sm:$0xf]
        %v1550 = vunpack.c.l.b16 %v1542
        %v1551 = vunpack.c.l.b16 %v1543
        %v1552 = vunpack.c.l.b16 %v1544
        %v1553 = vunpack.c.l.b16 %v1545
        %v1554 = vpack.c.b16 %v1551, %v1550
        %v1555 = vpack.c.b16 %v1553, %v1552
        %v1559 = vsel %vm562, %v1541, 0
        %1561 = vmatprep.subr.bf16.mxu0 0
        %1562 = vmatpush1.bf16.msra.mxu0 0
        %1563 = vmatprep.subr.bf16.mxu0 0
        %1564 = vmatpush1.bf16.msra.mxu0 0
        %1565 = vmatprep.subr.bf16.mxu0 0
        %1566 = vmatpush1.bf16.msra.mxu0 0
        %1567 = vmatprep.subr.bf16.mxu0 0
        %1568 = vmatpush1.bf16.msra.mxu0 0
        %1569 = vmatprep.subr.bf16.mxu0 0
        %1570 = vmatpush1.bf16.msra.mxu0 0
        %1571 = vmatprep.subr.bf16.mxu0 0
        %1572 = vmatpush1.bf16.msra.mxu0 0
        %1573 = vmatprep.subr.bf16.mxu0 0
        %1574 = vmatpush1.bf16.msra.mxu0 %v1555
        %1575 = vmatprep.subr.bf16.mxu0 0
        %1576 = vmatpush1.bf16.msra.mxu0 %v1554
        %1577 = vmatprep.subr.bf16.mxu0 0
        %1578 = vmatpush2.bf16.msra.mxu0 0
        %1579 = vmatprep.subr.bf16.mxu0 0
        %1580 = vmatpush2.bf16.msra.mxu0 0
        %1581 = vmatprep.subr.bf16.mxu0 0
        %1582 = vmatpush2.bf16.msra.mxu0 0
        %1583 = vmatprep.subr.bf16.mxu0 0
        %1584 = vmatpush2.bf16.msra.mxu0 0
        %1585 = vmatprep.subr.bf16.mxu0 0
        %1586 = vmatpush2.bf16.msra.mxu0 0
        %1587 = vmatprep.subr.bf16.mxu0 0
        %1588 = vmatpush2.bf16.msra.mxu0 0
        %1589 = vmatprep.subr.bf16.mxu0 0
        %1590 = vmatpush2.bf16.msra.mxu0 0
        %1591 = vmatprep.subr.bf16.mxu0 0
        %1592 = vmatpush2.bf16.msra.mxu0 0
        %1593 = vmatprep.mubr.bf16.mxu0 0
        %1594 = vmatmul.mubr.bf16.gmra.mxu0 %v1559
        %v1595 = vpop.f32.mrf.mxu0
        %v1596 = vadd.f32 0.0, %v1595
        %v1597 = vpop.f32.mrf.mxu0
        %v1598 = vpop.f32.mrf.mxu0
        %v1599 = vpop.f32.mrf.mxu0
        %1600 = vdwg.mxu0
        %v1601 = vmul.f32 %v1596, 0.5
        %v1602 = vmul.f32 %v1596, 0.70710677
        %vm1603 = vcmp.ge.f32.partialorder %v1602, 0.0
        %v1604 = vsel %vm1603, 1.0, -1.0
        %v1605 = vand.u32 2147483647, %v1602
        %v1606 = vmul.f32 %v1605, 0.3275911
        %v1607 = vadd.f32 %v1606, 1.0
        %v1608 = vrcp.pop %v1607
        %v1609 = vmul.f32 %v1608, 1.0614054
        %v1610 = vadd.f32 %v1609, -1.4531521
        %v1611 = vmul.f32 %v1610, %v1608
        %v1612 = vadd.f32 %v1611, 1.4214138
        %v1613 = vmul.f32 %v1612, %v1608
        %v1614 = vadd.f32 %v1613, -0.28449672
        %v1615 = vmul.f32 %v1614, %v1608
        %v1616 = vadd.f32 %v1615, 0.2548296
        %v1617 = vmul.f32 %v1616, %v1608
        %v1618 = vsub.f32 0.0, %v1605
        %v1619 = vmul.f32 %v1618, %v1605
        %v1620 = vmul.f32 %v1619, 1.442695
        %v1621 = vpow.pop %v1620
        %v1622 = vmul.f32 %v1617, %v1621
        %v1623 = vsub.f32 1.0, %v1622
        %v1624 = vmul.f32 %v1604, %v1623
        %v1625 = vadd.f32 %v1624, 1.0
        %v1626 = vmul.f32 %v1601, %v1625
        %v1627 = vpack.c.bf16 %v1626, %v1626
        %v1628 = vld [vmem:[%s13] sm:$0xf]
        %v1629 = vld [vmem:[%s13 + $0x4] sm:$0xf]
        %v1630 = vld [vmem:[%s13 + $0x8] sm:$0xf]
        %v1631 = vld [vmem:[%s13 + $0xc] sm:$0xf]
        %v1632 = vld [vmem:[%s13 + $0x10] sm:$0xf]
        %v1633 = vld [vmem:[%s13 + $0x14] sm:$0xf]
        %v1634 = vld [vmem:[%s13 + $0x18] sm:$0xf]
        %v1635 = vld [vmem:[%s13 + $0x1c] sm:$0xf]
        %v1636 = vld [vmem:[%s13 + $0x20] sm:$0xf]
        %v1637 = vld [vmem:[%s13 + $0x24] sm:$0xf]
        %v1638 = vld [vmem:[%s13 + $0x28] sm:$0xf]
        %v1639 = vld [vmem:[%s13 + $0x2c] sm:$0xf]
        %v1640 = vld [vmem:[%s13 + $0x30] sm:$0xf]
        %v1641 = vld [vmem:[%s13 + $0x34] sm:$0xf]
        %v1642 = vld [vmem:[%s13 + $0x38] sm:$0xf]
        %v1643 = vld [vmem:[%s13 + $0x3c] sm:$0xf]
        %v1660 = vunpack.c.l.b16 %v1628
        %v1661 = vunpack.c.l.b16 %v1629
        %v1662 = vunpack.c.l.b16 %v1630
        %v1663 = vunpack.c.l.b16 %v1631
        %v1664 = vunpack.c.l.b16 %v1632
        %v1665 = vunpack.c.l.b16 %v1633
        %v1666 = vunpack.c.l.b16 %v1634
        %v1667 = vunpack.c.l.b16 %v1635
        %v1668 = vunpack.c.l.b16 %v1636
        %v1669 = vunpack.c.l.b16 %v1637
        %v1670 = vunpack.c.l.b16 %v1638
        %v1671 = vunpack.c.l.b16 %v1639
        %v1672 = vunpack.c.l.b16 %v1640
        %v1673 = vunpack.c.l.b16 %v1641
        %v1674 = vunpack.c.l.b16 %v1642
        %v1675 = vunpack.c.l.b16 %v1643
        %v1676 = vpack.c.b16 %v1661, %v1660
        %v1677 = vpack.c.b16 %v1663, %v1662
        %v1678 = vpack.c.b16 %v1665, %v1664
        %v1679 = vpack.c.b16 %v1667, %v1666
        %v1680 = vpack.c.b16 %v1669, %v1668
        %v1681 = vpack.c.b16 %v1671, %v1670
        %v1682 = vpack.c.b16 %v1673, %v1672
        %v1683 = vpack.c.b16 %v1675, %v1674
        %1692 = vmatprep.subr.bf16.mxu0 0
        %1693 = vmatpush1.bf16.msra.mxu0 %v1683
        %1694 = vmatprep.subr.bf16.mxu0 0
        %1695 = vmatpush1.bf16.msra.mxu0 %v1682
        %1696 = vmatprep.subr.bf16.mxu0 0
        %1697 = vmatpush1.bf16.msra.mxu0 %v1681
        %1698 = vmatprep.subr.bf16.mxu0 0
        %1699 = vmatpush1.bf16.msra.mxu0 %v1680
        %1700 = vmatprep.subr.bf16.mxu0 0
        %1701 = vmatpush1.bf16.msra.mxu0 %v1679
        %1702 = vmatprep.subr.bf16.mxu0 0
        %1703 = vmatpush1.bf16.msra.mxu0 %v1678
        %1704 = vmatprep.subr.bf16.mxu0 0
        %1705 = vmatpush1.bf16.msra.mxu0 %v1677
        %1706 = vmatprep.subr.bf16.mxu0 0
        %1707 = vmatpush1.bf16.msra.mxu0 %v1676
        %1708 = vmatprep.subr.bf16.mxu0 0
        %1709 = vmatpush2.bf16.msra.mxu0 0
        %1710 = vmatprep.subr.bf16.mxu0 0
        %1711 = vmatpush2.bf16.msra.mxu0 0
        %1712 = vmatprep.subr.bf16.mxu0 0
        %1713 = vmatpush2.bf16.msra.mxu0 0
        %1714 = vmatprep.subr.bf16.mxu0 0
        %1715 = vmatpush2.bf16.msra.mxu0 0
        %1716 = vmatprep.subr.bf16.mxu0 0
        %1717 = vmatpush2.bf16.msra.mxu0 0
        %1718 = vmatprep.subr.bf16.mxu0 0
        %1719 = vmatpush2.bf16.msra.mxu0 0
        %1720 = vmatprep.subr.bf16.mxu0 0
        %1721 = vmatpush2.bf16.msra.mxu0 0
        %1722 = vmatprep.subr.bf16.mxu0 0
        %1723 = vmatpush2.bf16.msra.mxu0 0
        %1724 = vmatprep.mubr.bf16.mxu0 0
        %1725 = vmatmul.mubr.bf16.gmra.mxu0 %v1627
        %v1726 = vpop.f32.mrf.mxu0
        %v1727 = vadd.f32 0.0, %v1726
        %v1728 = vpop.f32.mrf.mxu0
        %v1729 = vpop.f32.mrf.mxu0
        %v1730 = vpop.f32.mrf.mxu0
        %1731 = vdwg.mxu0
        %v1732 = vstv %s1508
        %v1733 = vmul.f32 %v1732, %v1727
        %v1734 = vadd.f32 %v1511, %v1733
        %1735 = vst.msk [vmem:[%s538] sm:$0xff] %vm562, %v1734
        %s1736 = sand.u32 %s373, 1
        %s1737 = scalar_lea.sflag [#allocation4], %s1736
        %s1738 = sand.u32 %s373, 1
        %s1739 = smul.addr %s1738, 8
        %s1740 = scalar_lea.vmem [#allocation6], %s1739
        // Predicated region
        $region85: #{branch_1_fun.1} parent=79 // pred_check
          %p1741 = pneg %p383
        $region86: #{branch_1_fun.1} parent=79 // pred_check_branch
          %1743 = sbr.rel (%p1741) target = $region88
        $region87: #{branch_1_fun.1} parent=79 // pred_region
          %s1745 = ssub.s32 128, 128
          %1746 = vsyncadd %s1737, %s1745
          %s1747 = smul.addr %s30, 128
          %s1748 = scalar_lea.hbm %s15, %s1747
          %s1750 = sshll.u32 %s1740, 4
          %s1751 = int_to_ptr.vmem [resolvable:$true] %s1750
          %1753 = dma.vmem_to_hbm [thread:$0]  %s1751, 128, %s1748, %s1737
        $region88: #{branch_1_fun.1} parent=79 // pred_fallthru
          _
      $region80: #{branch_1_fun.1} parent=5 // pred_fallthru
        _
      %p1754 = scmp.le.s32.totalorder 2, %s25
      // Predicated region
      $region89: #{branch_1_fun.1} parent=5 // pred_check
        %p1755 = pneg %p1754
      $region90: #{branch_1_fun.1} parent=5 // pred_check_branch
        %1757 = sbr.rel (%p1755) target = $region92
      $region91: #{branch_1_fun.1} parent=5 // pred_region
        %s1758 = ssub.s32 %s25, 2
        // Predicated region
        $region93: #{branch_1_fun.1} parent=91 // pred_check
          %p1759 = pneg %p389
        $region94: #{branch_1_fun.1} parent=91 // pred_check_branch
          %1761 = sbr.rel (%p1759) target = $region96
        $region95: #{branch_1_fun.1} parent=91 // pred_region
          %s1762 = sand.u32 %s374, 1
          %s1763 = scalar_lea.sflag [#allocation4], %s1762
          %s1764 = sand.u32 %s374, 1
          %s1765 = smul.addr %s1764, 8
          %s1766 = scalar_lea.vmem [#allocation6], %s1765
          %1767 = dma.done %s1763, 128
        $region96: #{branch_1_fun.1} parent=91 // pred_fallthru
          _
      $region92: #{branch_1_fun.1} parent=5 // pred_fallthru
        _
    $region6: #{branch_1_fun.1} parent=1 // loop_footer
      %s29 = sadd.s32 1, %s25
    $region7: #{branch_1_fun.1} parent=1 // loop_footer_branch
      %24 = sbr.rel target = $region3
    $region8: #{branch_1_fun.1} parent=1 // loop_exit
      _
    %1768 = vsyncpa [#allocation4], 1
    %s1769 = scalar_lea.sflag [#allocation4], 1
    %1770 = vsyncpa %s1769, 1
    %1771 = vsyncpa [#allocation5], 1
    %s1772 = scalar_lea.sflag [#allocation5], 1
    %1773 = vsyncpa %s1772, 1

</llo_original>
